<compile_context>
chip_gen: v7x
topology: tpu7x:2x2x1
jax: 0.10.0
libtpu: 0.0.40
codegen_flags: <defaults>
</compile_context>

<pallas_src>
import numpy as np

import jax
import jax.numpy as jnp
from jax.experimental import pallas as pl
from jax.experimental.pallas import tpu as pltpu

LANE = 128      # lane width; also v5e-friendly MXU tile multiple
SUBLANE = 8


def _round_up(n, m):
    return (n + m - 1) // m * m


# ----------------------------------------------------------------------------
# Parameter init (PyTorch layouts preserved)
# ----------------------------------------------------------------------------
def init_params(key, latent_dim, num_layers, initial_filters, output_channels,
                seq_length):
    fm = 2
    fc_out = (initial_filters * fm ** (num_layers - 1) * 3 * seq_length
              // 2 ** num_layers)
    key, kw, kb = jax.random.split(key, 3)
    params = {
        'fc_w': jax.random.normal(kw, (fc_out, latent_dim), jnp.float32) * 0.1,
        'fc_b': jax.random.normal(kb, (fc_out,), jnp.float32) * 0.1,
        'layers': [],
    }
    for i in range(num_layers):
        in_ch = initial_filters * fm ** (num_layers - i - 1) * 3
        out_ch = (initial_filters * fm ** (num_layers - i - 2)
                  if i != num_layers - 1 else output_channels)
        layer = {'final': i == num_layers - 1}
        for ksz in (3, 5, 7):
            key, k1, k2 = jax.random.split(key, 3)
            # ConvTranspose1d weight shape: (in_ch, out_ch, ksz)
            layer[f'w{ksz}'] = jax.random.normal(
                k1, (in_ch, out_ch, ksz), jnp.float32) * 0.1
            layer[f'b{ksz}'] = jax.random.normal(
                k2, (out_ch,), jnp.float32) * 0.1
        layer['gamma'] = jnp.ones((3 * out_ch,), jnp.float32)
        layer['beta'] = jnp.zeros((3 * out_ch,), jnp.float32)
        params['layers'].append(layer)
    return params


# ----------------------------------------------------------------------------
# One-time prepare: fold all weight assembly / layout plumbing into padded,
# lane-dense matrices consumed by the fused kernel.
# ----------------------------------------------------------------------------
def _conv_transpose_block_matrix(layer, l_in):
    """Dense (L_in*Cin, L_out*3*Cout) matrix implementing the three parallel
    stride-2 ConvTranspose1d branches (k=3/5/7, padding=(k-1)//2,
    output_padding=1) + channel concat, on position-major / channel-minor
    flattened activations:
        y[b, t, bidx*Cout+co] = sum_{ci,j} x[b, j, ci] * w_bidx[ci, co, t+pad-2j]
    """
    w3 = np.asarray(layer['w3'])
    cin, cout = w3.shape[0], w3.shape[1]
    l_out = 2 * l_in
    ctot = 3 * cout
    big = np.zeros((l_in * cin, l_out * ctot), np.float32)
    for bidx, ksz in enumerate((3, 5, 7)):
        w = np.asarray(layer[f'w{ksz}'])          # (Cin, Cout, k)
        pad = (ksz - 1) // 2
        for t in range(l_out):
            for j in range(l_in):
                tap = t + pad - 2 * j
                if 0 <= tap < ksz:
                    big[j * cin:(j + 1) * cin,
                        t * ctot + bidx * cout:t * ctot + (bidx + 1) * cout] \
                        = w[:, :, tap]
    bias = np.concatenate([np.asarray(layer['b3']), np.asarray(layer['b5']),
                           np.asarray(layer['b7'])])
    bias_full = np.tile(bias, l_out)[None, :]      # (1, L_out*Ctot)
    return big, bias_full


def prepare_params(params, seq_length, matmul_dtype=jnp.float32):
    """Fold weights into 128-lane-padded matrices.  `matmul_dtype` (f32 or
    bf16) is the storage/operand dtype of the *large* MXU matrices only; the
    BN statistics path and all elementwise params stay f32."""
    num_layers = len(params['layers'])
    l0 = seq_length // 2 ** num_layers
    fc_w = np.asarray(params['fc_w'])              # (fc_out, latent)
    fc_b = np.asarray(params['fc_b'])
    latent = fc_w.shape[1]
    c0 = fc_w.shape[0] // l0

    # fc_initial + .view(B, C0, L0) -> position-major/channel-minor flatten,
    # folded into a column permutation of the fc weight/bias.
    perm = np.arange(c0 * l0).reshape(c0, l0).T.reshape(-1)
    n0 = l0 * c0
    n0_p = _round_up(n0, LANE)
    k_p = _round_up(latent, LANE)

    fc_w_pad = np.zeros((k_p, n0_p), np.float32)
    fc_w_pad[:latent, :n0] = fc_w.T[:, perm]
    fc_b_pad = np.zeros((1, n0_p), np.float32)
    fc_b_pad[0, :n0] = fc_b[perm]

    prep = {
        'fc_w': jnp.asarray(fc_w_pad, dtype=matmul_dtype),   # (Kp, N0p)
        'fc_b': jnp.asarray(fc_b_pad),                        # f32, post-dot add
        'layers': [],
        'seq_length': seq_length,
        'latent': latent,
        'k_pad': k_p,
        'matmul_dtype': matmul_dtype,
    }

    l_in = l0
    n_in_p = n0_p
    for layer in params['layers']:
        big, bias = _conv_transpose_block_matrix(layer, l_in)
        l_out = 2 * l_in
        ctot = 3 * np.asarray(layer['w3']).shape[1]
        n_out = l_out * ctot
        n_out_p = _round_up(n_out, LANE)
        ctot_p = _round_up(ctot, LANE)

        w_pad = np.zeros((n_in_p, n_out_p), np.float32)
        w_pad[:big.shape[0], :n_out] = big
        b_pad = np.zeros((1, n_out_p), np.float32)
        b_pad[0, :n_out] = bias[0]

        entry = {'final': layer['final'], 'l_out': l_out,
                 'w': jnp.asarray(w_pad, dtype=matmul_dtype),
                 'b': jnp.asarray(b_pad)}
        if not layer['final']:
            # column (t, c) -> channel c sum (fold) / broadcast (unfold).
            fold = np.zeros((n_out_p, ctot_p), np.float32)
            cols = np.arange(n_out)
            fold[cols, cols % ctot] = 1.0
            gamma_pad = np.zeros((1, ctot_p), np.float32)
            gamma_pad[0, :ctot] = np.asarray(layer['gamma'])
            beta_pad = np.zeros((1, ctot_p), np.float32)
            beta_pad[0, :ctot] = np.asarray(layer['beta'])
            entry['gamma'] = jnp.asarray(gamma_pad)
            entry['beta'] = jnp.asarray(beta_pad)
            # BN stats path stays f32 on every chip (tiny dots, v5e-safe).
            entry['fold'] = jnp.asarray(fold)
            entry['unfold'] = jnp.asarray(fold.T)
        prep['layers'].append(entry)
        l_in = l_out
        n_in_p = n_out_p

    # final channel mean: columns (t, c) -> position t, weight 1/Ctot_f
    ctot_f = 3 * np.asarray(params['layers'][-1]['w3']).shape[1]
    n_f = l_in * ctot_f
    s_p = _round_up(seq_length, LANE)
    mean_fold = np.zeros((n_in_p, s_p), np.float32)
    rows = np.arange(n_f)
    mean_fold[rows, rows // ctot_f] = 1.0 / ctot_f
    prep['mean_fold'] = jnp.asarray(mean_fold, dtype=matmul_dtype)
    prep['seq_pad'] = s_p
    return prep


# ----------------------------------------------------------------------------
# Fused Pallas kernel: whole forward in one invocation, all operands in VMEM.
# ----------------------------------------------------------------------------
def _make_fused_kernel(layer_meta):
    """layer_meta: tuple of (is_final, inv_n); inv_n = 1/(B*L_out)."""

    def kernel(*refs):
        it = iter(refs)
        z = next(it)[...]
        fc_w = next(it)[...]
        fc_b = next(it)[...]

        def mxu(a, w):
            # cast the activation operand to the weight dtype (bf16 on
            # v6e/v7x), always accumulate in f32.
            return jnp.dot(a.astype(w.dtype), w,
                           preferred_element_type=jnp.float32)

        # hoisted constant for the (1,B)x(B,N) batch-sum dots
        ones_row = jnp.ones((1, z.shape[0]), jnp.float32)

        # fc_initial (+ .view permutation folded into fc_w / fc_b)
        x = mxu(z, fc_w) + fc_b

        for is_final, inv_n in layer_meta:
            w = next(it)[...]
            b = next(it)[...]
            # three parallel ConvTranspose1d branches + concat == one matmul
            y = mxu(x, w) + b
            if not is_final:
                gamma = next(it)[...]        # (1, Cp)
                beta = next(it)[...]         # (1, Cp)
                fold = next(it)[...]         # (Np, Cp)
                unfold = next(it)[...]       # (Cp, Np)
                # training-mode BatchNorm1d stats over (batch, positions):
                # batch sums on the MXU, then ONE fused fold dot for
                # [sum, sum_sq] and ONE fused unfold dot for [scale, shift].
                s_sum = jnp.dot(ones_row, y, preferred_element_type=jnp.float32)
                s_sq = jnp.dot(ones_row, y * y,
                               preferred_element_type=jnp.float32)
                stats = jnp.dot(jnp.concatenate([s_sum, s_sq], axis=0), fold,
                                preferred_element_type=jnp.float32) * inv_n
                mean = stats[0:1, :]
                var = jnp.maximum(stats[1:2, :] - mean * mean, 0.0)
                scale = gamma * jax.lax.rsqrt(var + 1e-5)
                shift = beta - mean * scale
                ss = jnp.dot(jnp.concatenate([scale, shift], axis=0), unfold,
                             preferred_element_type=jnp.float32)   # (2, Np)
                yn = y * ss[0:1, :] + ss[1:2, :]
                # ELU(alpha=1); min() keeps exp off the positive branch.
                y = jnp.where(yn > 0, yn,
                              jnp.exp(jnp.minimum(yn, 0.0)) - 1.0)
            x = y

        mean_fold = next(it)[...]
        o_ref = next(it)
        # tanh(channel mean), written lane-dense as (B, seq_pad)
        o_ref[...] = jnp.tanh(mxu(x, mean_fold))

    return kernel


def forward_pallas(prep, z):
    B = z.shape[0]
    assert B % SUBLANE == 0, "batch must be a multiple of 8 (whole-batch BN)"
    seq_length = prep['seq_length']
    seq_pad = prep['seq_pad']
    k_pad = prep['k_pad']
    latent = prep['latent']

    # lane-dense latent input (zeros in the padded K rows of fc_w)
    z_pad = jnp.pad(z.astype(jnp.float32), ((0, 0), (0, k_pad - latent)))

    inputs = [z_pad, prep['fc_w'], prep['fc_b']]
    layer_meta = []
    flops = 2.0 * B * k_pad * prep['fc_w'].shape[1]
    transcendentals = 0.0
    for entry in prep['layers']:
        inputs += [entry['w'], entry['b']]
        n_in_p, n_out_p = entry['w'].shape
        flops += 2.0 * B * n_in_p * n_out_p
        if entry['final']:
            layer_meta.append((True, 0.0))
        else:
            inputs += [entry['gamma'], entry['beta'], entry['fold'],
                       entry['unfold']]
            layer_meta.append((False, 1.0 / float(B * entry['l_out'])))
            ctot_p = entry['fold'].shape[1]
            flops += 2.0 * (2 * B * n_out_p            # batch-sum dots
                            + 2 * n_out_p * ctot_p     # fused fold dot
                            + 2 * ctot_p * n_out_p)    # fused unfold dot
            flops += 5.0 * B * n_out_p                 # BN apply + ELU (VPU)
            transcendentals += B * n_out_p + ctot_p    # exp + rsqrt
    inputs.append(prep['mean_fold'])
    flops += 2.0 * B * prep['mean_fold'].shape[0] * seq_pad
    transcendentals += B * seq_pad                     # tanh

    bytes_accessed = sum(int(np.prod(a.shape)) * a.dtype.itemsize
                         for a in inputs) + B * seq_pad * 4

    # VMEM budget from the actual footprint (+ live activation slabs), with
    # headroom, clamped to the v7x 64 MiB physical ceiling.
    max_n = max([e['w'].shape[1] for e in prep['layers']]
                + [prep['fc_w'].shape[1], seq_pad])
    act_bytes = 4 * B * max_n * 4
    vmem_limit = int(min(64 * 1024 * 1024,
                         max(16 * 1024 * 1024,
                             2 * (bytes_accessed + act_bytes))))

    vmem_spec = pl.BlockSpec(memory_space=pltpu.MemorySpace.VMEM)
    out_pad = pl.pallas_call(
        _make_fused_kernel(tuple(layer_meta)),
        out_shape=jax.ShapeDtypeStruct((B, seq_pad), jnp.float32),
        in_specs=[vmem_spec] * len(inputs),
        out_specs=vmem_spec,
        compiler_params=pltpu.CompilerParams(vmem_limit_bytes=vmem_limit),
        cost_estimate=pl.CostEstimate(flops=int(flops),
                                      transcendentals=int(transcendentals),
                                      bytes_accessed=int(bytes_accessed)),
    )(*inputs)
    # lane-dense padded kernel output -> PyTorch NCL (B, 1, seq_length)
    return out_pad[:, None, :seq_length]


# ----------------------------------------------------------------------------
# Pure-JAX reference (NCL, lax conv) for correctness checking
# ----------------------------------------------------------------------------
def _conv_transpose1d_ref(x, w, b):
    k = w.shape[2]
    pad = (k - 1) // 2
    kern = jnp.transpose(w[:, :, ::-1], (1, 0, 2))  # (Cout, Cin, k)
    y = jax.lax.conv_general_dilated(
        x, kern, window_strides=(1,),
        padding=[(k - 1 - pad, k - 1 - pad + 1)],
        lhs_dilation=(2,), rhs_dilation=(1,),
        dimension_numbers=('NCH', 'OIH', 'NCH'))
    return y + b[None, :, None]


def forward_ref(params, z, num_layers, seq_length):
    B = z.shape[0]
    L0 = seq_length // 2 ** num_layers
    h = z @ params['fc_w'].T + params['fc_b']
    x = h.reshape(B, -1, L0)  # NCL
    for layer in params['layers']:
        outs = [_conv_transpose1d_ref(x, layer[f'w{k}'], layer[f'b{k}'])
                for k in (3, 5, 7)]
        x = jnp.concatenate(outs, axis=1)
        if not layer['final']:
            mean = jnp.mean(x, axis=(0, 2), keepdims=True)
            var = jnp.var(x, axis=(0, 2), keepdims=True)
            x = ((x - mean) / jnp.sqrt(var + 1e-5)
                 * layer['gamma'][None, :, None] + layer['beta'][None, :, None])
            x = jnp.where(x > 0, x, jnp.exp(x) - 1.0)
    return jnp.tanh(jnp.mean(x, axis=1, keepdims=True))


# ----------------------------------------------------------------------------
if __name__ == "__main__":
    latent_dim, num_layers, initial_filters, output_channels = 16, 2, 4, 1
    seq_length = 16
    batch = 256   # perf-review item 1: fill the MXU M rows (was 2)

    key = jax.random.PRNGKey(0)
    kp, kz = jax.random.split(key)
    params = init_params(kp, latent_dim, num_layers, initial_filters,
                         output_channels, seq_length)
    z = jax.random.normal(kz, (batch, latent_dim), jnp.float32)

    # --- f32 MXU operands: tight correctness check against pure-JAX ref ----
    prep_f32 = prepare_params(params, seq_length, matmul_dtype=jnp.float32)
    fwd_f32 = jax.jit(lambda zz: forward_pallas(prep_f32, zz))
    out_f32 = jax.block_until_ready(fwd_f32(z))
    assert out_f32.shape == (batch, 1, seq_length), out_f32.shape

    ref = forward_ref(params, z, num_layers, seq_length)
    max_diff = float(jnp.max(jnp.abs(out_f32 - ref)))
    assert jnp.allclose(out_f32, ref, atol=2e-3, rtol=2e-3), ("max diff", max_diff)

    # --- bf16 MXU operands (v6e/v7x path); BN/ELU/tanh stay f32 ------------
    prep_bf16 = prepare_params(params, seq_length, matmul_dtype=jnp.bfloat16)
    fwd_bf16 = jax.jit(lambda zz: forward_pallas(prep_bf16, zz))
    out_bf16 = jax.block_until_ready(fwd_bf16(z))
    assert out_bf16.shape == (batch, 1, seq_length)
    assert bool(jnp.all(jnp.isfinite(out_bf16)))
    assert float(jnp.max(jnp.abs(out_bf16 - out_f32))) < 0.1

    print("KERNEL_OK")
</pallas_src>

<mosaic_0001>
module attributes {stable_mosaic.version = 11 : i64} {
  func.func @kernel(%arg0: memref<256x128xf32, #tpu.memory_space<vmem>>, %arg1: memref<128x128xf32, #tpu.memory_space<vmem>>, %arg2: memref<1x128xf32, #tpu.memory_space<vmem>>, %arg3: memref<128x128xf32, #tpu.memory_space<vmem>>, %arg4: memref<1x128xf32, #tpu.memory_space<vmem>>, %arg5: memref<1x128xf32, #tpu.memory_space<vmem>>, %arg6: memref<1x128xf32, #tpu.memory_space<vmem>>, %arg7: memref<128x128xf32, #tpu.memory_space<vmem>>, %arg8: memref<128x128xf32, #tpu.memory_space<vmem>>, %arg9: memref<128x128xf32, #tpu.memory_space<vmem>>, %arg10: memref<1x128xf32, #tpu.memory_space<vmem>>, %arg11: memref<128x128xf32, #tpu.memory_space<vmem>>, %arg12: memref<256x128xf32, #tpu.memory_space<vmem>>) attributes {dimension_semantics = [], scalar_prefetch = 0 : i64, scratch_operands = 0 : i64, tpu.core_type = #tpu.core_type<tc>} {
    %c0 = arith.constant 0 : index
    %c0_0 = arith.constant 0 : index
    %0 = vector.load %arg0[%c0, %c0_0] : memref<256x128xf32, #tpu.memory_space<vmem>>, vector<256x128xf32>
    %c0_1 = arith.constant 0 : index
    %c0_2 = arith.constant 0 : index
    %1 = vector.load %arg1[%c0_1, %c0_2] : memref<128x128xf32, #tpu.memory_space<vmem>>, vector<128x128xf32>
    %c0_3 = arith.constant 0 : index
    %c0_4 = arith.constant 0 : index
    %2 = vector.load %arg2[%c0_3, %c0_4] : memref<1x128xf32, #tpu.memory_space<vmem>>, vector<1x128xf32>
    %cst = arith.constant 1.000000e+00 : f32
    %3 = vector.broadcast %cst : f32 to vector<1x256xf32>
    %cst_5 = arith.constant dense<0.000000e+00> : vector<256x128xf32>
    %4 = tpu.matmul %0, %1, %cst_5 {dimension_numbers = #tpu.dot_dimension_numbers<[1], [0], [0], [1], [0, 0, 1, 1], [], []>} : vector<256x128xf32>, vector<128x128xf32>, vector<256x128xf32> -> vector<256x128xf32>
    %5 = vector.broadcast %2 : vector<1x128xf32> to vector<256x128xf32>
    %6 = arith.addf %4, %5 : vector<256x128xf32>
    %c0_6 = arith.constant 0 : index
    %c0_7 = arith.constant 0 : index
    %7 = vector.load %arg3[%c0_6, %c0_7] : memref<128x128xf32, #tpu.memory_space<vmem>>, vector<128x128xf32>
    %c0_8 = arith.constant 0 : index
    %c0_9 = arith.constant 0 : index
    %8 = vector.load %arg4[%c0_8, %c0_9] : memref<1x128xf32, #tpu.memory_space<vmem>>, vector<1x128xf32>
    %cst_10 = arith.constant dense<0.000000e+00> : vector<256x128xf32>
    %9 = tpu.matmul %6, %7, %cst_10 {dimension_numbers = #tpu.dot_dimension_numbers<[1], [0], [0], [1], [0, 0, 1, 1], [], []>} : vector<256x128xf32>, vector<128x128xf32>, vector<256x128xf32> -> vector<256x128xf32>
    %10 = vector.broadcast %8 : vector<1x128xf32> to vector<256x128xf32>
    %11 = arith.addf %9, %10 : vector<256x128xf32>
    %c0_11 = arith.constant 0 : index
    %c0_12 = arith.constant 0 : index
    %12 = vector.load %arg5[%c0_11, %c0_12] : memref<1x128xf32, #tpu.memory_space<vmem>>, vector<1x128xf32>
    %c0_13 = arith.constant 0 : index
    %c0_14 = arith.constant 0 : index
    %13 = vector.load %arg6[%c0_13, %c0_14] : memref<1x128xf32, #tpu.memory_space<vmem>>, vector<1x128xf32>
    %c0_15 = arith.constant 0 : index
    %c0_16 = arith.constant 0 : index
    %14 = vector.load %arg7[%c0_15, %c0_16] : memref<128x128xf32, #tpu.memory_space<vmem>>, vector<128x128xf32>
    %c0_17 = arith.constant 0 : index
    %c0_18 = arith.constant 0 : index
    %15 = vector.load %arg8[%c0_17, %c0_18] : memref<128x128xf32, #tpu.memory_space<vmem>>, vector<128x128xf32>
    %cst_19 = arith.constant dense<0.000000e+00> : vector<1x128xf32>
    %16 = tpu.matmul %3, %11, %cst_19 {dimension_numbers = #tpu.dot_dimension_numbers<[1], [0], [0], [1], [0, 0, 1, 1], [], []>} : vector<1x256xf32>, vector<256x128xf32>, vector<1x128xf32> -> vector<1x128xf32>
    %17 = arith.mulf %11, %11 : vector<256x128xf32>
    %cst_20 = arith.constant dense<0.000000e+00> : vector<1x128xf32>
    %18 = tpu.matmul %3, %17, %cst_20 {dimension_numbers = #tpu.dot_dimension_numbers<[1], [0], [0], [1], [0, 0, 1, 1], [], []>} : vector<1x256xf32>, vector<256x128xf32>, vector<1x128xf32> -> vector<1x128xf32>
    %19 = tpu.concatenate %16, %18 in 0 : vector<1x128xf32>, vector<1x128xf32> -> vector<2x128xf32>
    %cst_21 = arith.constant dense<0.000000e+00> : vector<2x128xf32>
    %20 = tpu.matmul %19, %14, %cst_21 {dimension_numbers = #tpu.dot_dimension_numbers<[1], [0], [0], [1], [0, 0, 1, 1], [], []>} : vector<2x128xf32>, vector<128x128xf32>, vector<2x128xf32> -> vector<2x128xf32>
    %cst_22 = arith.constant 4.8828125E-4 : f32
    %21 = vector.broadcast %cst_22 : f32 to vector<2x128xf32>
    %22 = arith.mulf %20, %21 : vector<2x128xf32>
    %23 = vector.extract_strided_slice %22 {offsets = [0, 0], sizes = [1, 128], strides = [1, 1]} : vector<2x128xf32> to vector<1x128xf32>
    %24 = vector.extract_strided_slice %22 {offsets = [1, 0], sizes = [1, 128], strides = [1, 1]} : vector<2x128xf32> to vector<1x128xf32>
    %25 = arith.mulf %23, %23 : vector<1x128xf32>
    %26 = arith.subf %24, %25 : vector<1x128xf32>
    %cst_23 = arith.constant 0.000000e+00 : f32
    %27 = vector.broadcast %cst_23 : f32 to vector<1x128xf32>
    %28 = arith.maximumf %26, %27 : vector<1x128xf32>
    %cst_24 = arith.constant 9.99999974E-6 : f32
    %29 = vector.broadcast %cst_24 : f32 to vector<1x128xf32>
    %30 = arith.addf %28, %29 : vector<1x128xf32>
    %31 = math.rsqrt %30 : vector<1x128xf32>
    %32 = arith.mulf %12, %31 : vector<1x128xf32>
    %33 = arith.mulf %23, %32 : vector<1x128xf32>
    %34 = arith.subf %13, %33 : vector<1x128xf32>
    %35 = tpu.concatenate %32, %34 in 0 : vector<1x128xf32>, vector<1x128xf32> -> vector<2x128xf32>
    %cst_25 = arith.constant dense<0.000000e+00> : vector<2x128xf32>
    %36 = tpu.matmul %35, %15, %cst_25 {dimension_numbers = #tpu.dot_dimension_numbers<[1], [0], [0], [1], [0, 0, 1, 1], [], []>} : vector<2x128xf32>, vector<128x128xf32>, vector<2x128xf32> -> vector<2x128xf32>
    %37 = vector.extract_strided_slice %36 {offsets = [0, 0], sizes = [1, 128], strides = [1, 1]} : vector<2x128xf32> to vector<1x128xf32>
    %38 = vector.broadcast %37 : vector<1x128xf32> to vector<256x128xf32>
    %39 = arith.mulf %11, %38 : vector<256x128xf32>
    %40 = vector.extract_strided_slice %36 {offsets = [1, 0], sizes = [1, 128], strides = [1, 1]} : vector<2x128xf32> to vector<1x128xf32>
    %41 = vector.broadcast %40 : vector<1x128xf32> to vector<256x128xf32>
    %42 = arith.addf %39, %41 : vector<256x128xf32>
    %cst_26 = arith.constant 0.000000e+00 : f32
    %43 = vector.broadcast %cst_26 : f32 to vector<256x128xf32>
    %44 = arith.cmpf ogt, %42, %43 : vector<256x128xf32>
    %cst_27 = arith.constant 0.000000e+00 : f32
    %45 = vector.broadcast %cst_27 : f32 to vector<256x128xf32>
    %46 = arith.minimumf %42, %45 : vector<256x128xf32>
    %47 = math.exp %46 : vector<256x128xf32>
    %cst_28 = arith.constant 1.000000e+00 : f32
    %48 = vector.broadcast %cst_28 : f32 to vector<256x128xf32>
    %49 = arith.subf %47, %48 : vector<256x128xf32>
    %50 = arith.select %44, %42, %49 : vector<256x128xi1>, vector<256x128xf32>
    %c0_29 = arith.constant 0 : index
    %c0_30 = arith.constant 0 : index
    %51 = vector.load %arg9[%c0_29, %c0_30] : memref<128x128xf32, #tpu.memory_space<vmem>>, vector<128x128xf32>
    %c0_31 = arith.constant 0 : index
    %c0_32 = arith.constant 0 : index
    %52 = vector.load %arg10[%c0_31, %c0_32] : memref<1x128xf32, #tpu.memory_space<vmem>>, vector<1x128xf32>
    %cst_33 = arith.constant dense<0.000000e+00> : vector<256x128xf32>
    %53 = tpu.matmul %50, %51, %cst_33 {dimension_numbers = #tpu.dot_dimension_numbers<[1], [0], [0], [1], [0, 0, 1, 1], [], []>} : vector<256x128xf32>, vector<128x128xf32>, vector<256x128xf32> -> vector<256x128xf32>
    %54 = vector.broadcast %52 : vector<1x128xf32> to vector<256x128xf32>
    %55 = arith.addf %53, %54 : vector<256x128xf32>
    %c0_34 = arith.constant 0 : index
    %c0_35 = arith.constant 0 : index
    %56 = vector.load %arg11[%c0_34, %c0_35] : memref<128x128xf32, #tpu.memory_space<vmem>>, vector<128x128xf32>
    %cst_36 = arith.constant dense<0.000000e+00> : vector<256x128xf32>
    %57 = tpu.matmul %55, %56, %cst_36 {dimension_numbers = #tpu.dot_dimension_numbers<[1], [0], [0], [1], [0, 0, 1, 1], [], []>} : vector<256x128xf32>, vector<128x128xf32>, vector<256x128xf32> -> vector<256x128xf32>
    %58 = math.tanh %57 : vector<256x128xf32>
    %c0_37 = arith.constant 0 : index
    %c0_38 = arith.constant 0 : index
    %59 = vector.load %arg12[%c0_37, %c0_38] : memref<256x128xf32, #tpu.memory_space<vmem>>, vector<256x128xf32>
    tpu.vector_store %arg12[%c0_37, %c0_38], %58 {strides = array<i32>} : memref<256x128xf32, #tpu.memory_space<vmem>>, vector<256x128xf32>,
    return
  }
}

</mosaic_0001>

<llo_original>
// kernel: _lambda_.1
$region0: #{_lambda_.1}
  #allocation0 [shape = 'u32[]', space=smem, size = 0x4, offset = 0x4, fixed_abs, tag = 'smem constant byte address 0x4 - core index']
  #allocation1 [shape = 'u32[144,128]{1,0:T(1,128)}', space=vmem, size = 0x12000, scoped, tag = 'internal scratch']
  %s0 = inlined_call_operand.vmem [shape: f32[256,128], index: 0, kind: input, shape index: {}]
  %s1 = inlined_call_operand.vmem [shape: f32[128,128], index: 1, kind: input, shape index: {}]
  %s2 = inlined_call_operand.vmem [shape: f32[1,128], index: 2, kind: input, shape index: {}]
  %s3 = inlined_call_operand.vmem [shape: f32[128,128], index: 3, kind: input, shape index: {}]
  %s4 = inlined_call_operand.vmem [shape: f32[1,128], index: 4, kind: input, shape index: {}]
  %s5 = inlined_call_operand.vmem [shape: f32[1,128], index: 5, kind: input, shape index: {}]
  %s6 = inlined_call_operand.vmem [shape: f32[1,128], index: 6, kind: input, shape index: {}]
  %s7 = inlined_call_operand.vmem [shape: f32[128,128], index: 7, kind: input, shape index: {}]
  %s8 = inlined_call_operand.vmem [shape: f32[128,128], index: 8, kind: input, shape index: {}]
  %s9 = inlined_call_operand.vmem [shape: f32[128,128], index: 9, kind: input, shape index: {}]
  %s10 = inlined_call_operand.vmem [shape: f32[1,128], index: 10, kind: input, shape index: {}]
  %s11 = inlined_call_operand.vmem [shape: f32[128,128], index: 11, kind: input, shape index: {}]
  %s12 = inlined_call_operand.vmem [shape: f32[256,128], index: 12, kind: output, shape index: {}]
  %s13 = sld [smem:[#allocation0]]
  $region58: #{_lambda_.1} parent=0
    _
  %s15 = ssub.s32 1, %s13
  %s16 = scalar_select 0, %s15, %s13
  // Predicated region
  $region2: #{_lambda_.1} parent=0 // pred_check
    _
  $region3: #{_lambda_.1} parent=0 // pred_check_branch
    %18 = sbr.rel (0) target = $region5
  $region4: #{_lambda_.1} parent=0 // pred_region
    _
  $region5: #{_lambda_.1} parent=0 // pred_fallthru
    _
  // Predicated region
  $region6: #{_lambda_.1} parent=0 // pred_check
    _
  $region7: #{_lambda_.1} parent=0 // pred_check_branch
    %20 = sbr.rel (0) target = $region9
  $region8: #{_lambda_.1} parent=0 // pred_region
    _
  $region9: #{_lambda_.1} parent=0 // pred_fallthru
    _
  // Predicated region
  $region10: #{_lambda_.1} parent=0 // pred_check
    _
  $region11: #{_lambda_.1} parent=0 // pred_check_branch
    %22 = sbr.rel (0) target = $region13
  $region12: #{_lambda_.1} parent=0 // pred_region
    _
  $region13: #{_lambda_.1} parent=0 // pred_fallthru
    _
  // Predicated region
  $region14: #{_lambda_.1} parent=0 // pred_check
    _
  $region15: #{_lambda_.1} parent=0 // pred_check_branch
    %24 = sbr.rel (0) target = $region17
  $region16: #{_lambda_.1} parent=0 // pred_region
    _
  $region17: #{_lambda_.1} parent=0 // pred_fallthru
    _
  // Predicated region
  $region18: #{_lambda_.1} parent=0 // pred_check
    _
  $region19: #{_lambda_.1} parent=0 // pred_check_branch
    %26 = sbr.rel (0) target = $region21
  $region20: #{_lambda_.1} parent=0 // pred_region
    _
  $region21: #{_lambda_.1} parent=0 // pred_fallthru
    _
  // Predicated region
  $region22: #{_lambda_.1} parent=0 // pred_check
    _
  $region23: #{_lambda_.1} parent=0 // pred_check_branch
    %28 = sbr.rel (0) target = $region25
  $region24: #{_lambda_.1} parent=0 // pred_region
    _
  $region25: #{_lambda_.1} parent=0 // pred_fallthru
    _
  // Predicated region
  $region26: #{_lambda_.1} parent=0 // pred_check
    _
  $region27: #{_lambda_.1} parent=0 // pred_check_branch
    %30 = sbr.rel (0) target = $region29
  $region28: #{_lambda_.1} parent=0 // pred_region
    _
  $region29: #{_lambda_.1} parent=0 // pred_fallthru
    _
  // Predicated region
  $region30: #{_lambda_.1} parent=0 // pred_check
    _
  $region31: #{_lambda_.1} parent=0 // pred_check_branch
    %32 = sbr.rel (0) target = $region33
  $region32: #{_lambda_.1} parent=0 // pred_region
    _
  $region33: #{_lambda_.1} parent=0 // pred_fallthru
    _
  // Predicated region
  $region34: #{_lambda_.1} parent=0 // pred_check
    _
  $region35: #{_lambda_.1} parent=0 // pred_check_branch
    %34 = sbr.rel (0) target = $region37
  $region36: #{_lambda_.1} parent=0 // pred_region
    _
  $region37: #{_lambda_.1} parent=0 // pred_fallthru
    _
  // Predicated region
  $region38: #{_lambda_.1} parent=0 // pred_check
    _
  $region39: #{_lambda_.1} parent=0 // pred_check_branch
    %36 = sbr.rel (0) target = $region41
  $region40: #{_lambda_.1} parent=0 // pred_region
    _
  $region41: #{_lambda_.1} parent=0 // pred_fallthru
    _
  // Predicated region
  $region42: #{_lambda_.1} parent=0 // pred_check
    _
  $region43: #{_lambda_.1} parent=0 // pred_check_branch
    %38 = sbr.rel (0) target = $region45
  $region44: #{_lambda_.1} parent=0 // pred_region
    _
  $region45: #{_lambda_.1} parent=0 // pred_fallthru
    _
  // Predicated region
  $region46: #{_lambda_.1} parent=0 // pred_check
    _
  $region47: #{_lambda_.1} parent=0 // pred_check_branch
    %40 = sbr.rel (0) target = $region49
  $region48: #{_lambda_.1} parent=0 // pred_region
    _
  $region49: #{_lambda_.1} parent=0 // pred_fallthru
    _
  %v41 = vld [vmem:[%s0] sm:$0xff]
  %v42 = vld [vmem:[%s0 + $0x8] sm:$0xff]
  %v43 = vld [vmem:[%s0 + $0x10] sm:$0xff]
  %v44 = vld [vmem:[%s0 + $0x18] sm:$0xff]
  %v45 = vld [vmem:[%s0 + $0x20] sm:$0xff]
  %v46 = vld [vmem:[%s0 + $0x28] sm:$0xff]
  %v47 = vld [vmem:[%s0 + $0x30] sm:$0xff]
  %v48 = vld [vmem:[%s0 + $0x38] sm:$0xff]
  %v49 = vld [vmem:[%s0 + $0x40] sm:$0xff]
  %v50 = vld [vmem:[%s0 + $0x48] sm:$0xff]
  %v51 = vld [vmem:[%s0 + $0x50] sm:$0xff]
  %v52 = vld [vmem:[%s0 + $0x58] sm:$0xff]
  %v53 = vld [vmem:[%s0 + $0x60] sm:$0xff]
  %v54 = vld [vmem:[%s0 + $0x68] sm:$0xff]
  %v55 = vld [vmem:[%s0 + $0x70] sm:$0xff]
  %v56 = vld [vmem:[%s0 + $0x78] sm:$0xff]
  %v57 = vld [vmem:[%s0 + $0x80] sm:$0xff]
  %v58 = vld [vmem:[%s0 + $0x88] sm:$0xff]
  %v59 = vld [vmem:[%s0 + $0x90] sm:$0xff]
  %v60 = vld [vmem:[%s0 + $0x98] sm:$0xff]
  %v61 = vld [vmem:[%s0 + $0xa0] sm:$0xff]
  %v62 = vld [vmem:[%s0 + $0xa8] sm:$0xff]
  %v63 = vld [vmem:[%s0 + $0xb0] sm:$0xff]
  %v64 = vld [vmem:[%s0 + $0xb8] sm:$0xff]
  %v65 = vld [vmem:[%s0 + $0xc0] sm:$0xff]
  %v66 = vld [vmem:[%s0 + $0xc8] sm:$0xff]
  %v67 = vld [vmem:[%s0 + $0xd0] sm:$0xff]
  %v68 = vld [vmem:[%s0 + $0xd8] sm:$0xff]
  %v69 = vld [vmem:[%s0 + $0xe0] sm:$0xff]
  %v70 = vld [vmem:[%s0 + $0xe8] sm:$0xff]
  %v71 = vld [vmem:[%s0 + $0xf0] sm:$0xff]
  %v72 = vld [vmem:[%s0 + $0xf8] sm:$0xff]
  %v73 = vld [vmem:[%s1] sm:$0xff]
  %v74 = vld [vmem:[%s1 + $0x8] sm:$0xff]
  %v75 = vld [vmem:[%s1 + $0x10] sm:$0xff]
  %v76 = vld [vmem:[%s1 + $0x18] sm:$0xff]
  %v77 = vld [vmem:[%s1 + $0x20] sm:$0xff]
  %v78 = vld [vmem:[%s1 + $0x28] sm:$0xff]
  %v79 = vld [vmem:[%s1 + $0x30] sm:$0xff]
  %v80 = vld [vmem:[%s1 + $0x38] sm:$0xff]
  %v81 = vld [vmem:[%s1 + $0x40] sm:$0xff]
  %v82 = vld [vmem:[%s1 + $0x48] sm:$0xff]
  %v83 = vld [vmem:[%s1 + $0x50] sm:$0xff]
  %v84 = vld [vmem:[%s1 + $0x58] sm:$0xff]
  %v85 = vld [vmem:[%s1 + $0x60] sm:$0xff]
  %v86 = vld [vmem:[%s1 + $0x68] sm:$0xff]
  %v87 = vld [vmem:[%s1 + $0x70] sm:$0xff]
  %v88 = vld [vmem:[%s1 + $0x78] sm:$0xff]
  %v89 = vld [vmem:[%s2] sm:$0x1]
  %v91 = vlaneseq
  %v92 = vshrl.u32 %v91, 7
  %v93 = vsub.s32 0, %v92
  %v94 = vrot.slane %v89, %v93
  %96 = vmatprep.subr.mxu0 0.0
  %97 = vmatpush1.msra.mxu0 %v73
  %98 = vmatprep.subr.mxu0 0.0
  %99 = vmatpush1.msra.mxu0 %v74
  %100 = vmatprep.subr.mxu0 0.0
  %101 = vmatpush1.msra.mxu0 %v75
  %102 = vmatprep.subr.mxu0 0.0
  %103 = vmatpush1.msra.mxu0 %v76
  %104 = vmatprep.subr.mxu0 0.0
  %105 = vmatpush1.msra.mxu0 %v77
  %106 = vmatprep.subr.mxu0 0.0
  %107 = vmatpush1.msra.mxu0 %v78
  %108 = vmatprep.subr.mxu0 0.0
  %109 = vmatpush1.msra.mxu0 %v79
  %110 = vmatprep.subr.mxu0 0.0
  %111 = vmatpush1.msra.mxu0 %v80
  %112 = vmatprep.subr.mxu0 0.0
  %113 = vmatpush1.msra.mxu0 %v81
  %114 = vmatprep.subr.mxu0 0.0
  %115 = vmatpush1.msra.mxu0 %v82
  %116 = vmatprep.subr.mxu0 0.0
  %117 = vmatpush1.msra.mxu0 %v83
  %118 = vmatprep.subr.mxu0 0.0
  %119 = vmatpush1.msra.mxu0 %v84
  %120 = vmatprep.subr.mxu0 0.0
  %121 = vmatpush1.msra.mxu0 %v85
  %122 = vmatprep.subr.mxu0 0.0
  %123 = vmatpush1.msra.mxu0 %v86
  %124 = vmatprep.subr.mxu0 0.0
  %125 = vmatpush1.msra.mxu0 %v87
  %126 = vmatprep.subr.mxu0 0.0
  %127 = vmatpush1.msra.mxu0 %v88
  %128 = vmatprep.subr.mxu0 0.0
  %129 = vmatpush1.msra.mxu0 0.0
  %130 = vmatprep.subr.mxu0 0.0
  %131 = vmatpush1.msra.mxu0 0.0
  %132 = vmatprep.subr.mxu0 0.0
  %133 = vmatpush1.msra.mxu0 0.0
  %134 = vmatprep.subr.mxu0 0.0
  %135 = vmatpush1.msra.mxu0 0.0
  %136 = vmatprep.subr.mxu0 0.0
  %137 = vmatpush1.msra.mxu0 0.0
  %138 = vmatprep.subr.mxu0 0.0
  %139 = vmatpush1.msra.mxu0 0.0
  %140 = vmatprep.subr.mxu0 0.0
  %141 = vmatpush1.msra.mxu0 0.0
  %142 = vmatprep.subr.mxu0 0.0
  %143 = vmatpush1.msra.mxu0 0.0
  %144 = vmatprep.subr.mxu0 0.0
  %145 = vmatpush1.msra.mxu0 0.0
  %146 = vmatprep.subr.mxu0 0.0
  %147 = vmatpush1.msra.mxu0 0.0
  %148 = vmatprep.subr.mxu0 0.0
  %149 = vmatpush1.msra.mxu0 0.0
  %150 = vmatprep.subr.mxu0 0.0
  %151 = vmatpush1.msra.mxu0 0.0
  %152 = vmatprep.subr.mxu0 0.0
  %153 = vmatpush1.msra.mxu0 0.0
  %154 = vmatprep.subr.mxu0 0.0
  %155 = vmatpush1.msra.mxu0 0.0
  %156 = vmatprep.subr.mxu0 0.0
  %157 = vmatpush1.msra.mxu0 0.0
  %158 = vmatprep.subr.mxu0 0.0
  %159 = vmatpush1.msra.mxu0 0.0
  %160 = vmatprep.mubr.f32.mxu0 0.0
  %161 = vmatmul.mubr.f32.gmra.mrb[0].mxu0 %v41
  %v162 = vpop.f32.mrb[0].mxu0
  %v163 = vadd.f32 %v94, %v162
  %v164 = vpop.f32.mrb[0].mxu0
  %165 = vmatprep.mubr.f32.mxu0 0.0
  %166 = vmatmul.mubr.f32.gmra.mrb[0].mxu0 %v42
  %v167 = vpop.f32.mrb[0].mxu0
  %v168 = vadd.f32 %v94, %v167
  %v169 = vpop.f32.mrb[0].mxu0
  %170 = vmatprep.mubr.f32.mxu0 0.0
  %171 = vmatmul.mubr.f32.gmra.mrb[0].mxu0 %v43
  %v172 = vpop.f32.mrb[0].mxu0
  %v173 = vadd.f32 %v94, %v172
  %v174 = vpop.f32.mrb[0].mxu0
  %175 = vmatprep.mubr.f32.mxu0 0.0
  %176 = vmatmul.mubr.f32.gmra.mrb[0].mxu0 %v44
  %v177 = vpop.f32.mrb[0].mxu0
  %v178 = vadd.f32 %v94, %v177
  %v179 = vpop.f32.mrb[0].mxu0
  %180 = vmatprep.mubr.f32.mxu0 0.0
  %181 = vmatmul.mubr.f32.gmra.mrb[0].mxu0 %v45
  %v182 = vpop.f32.mrb[0].mxu0
  %v183 = vadd.f32 %v94, %v182
  %v184 = vpop.f32.mrb[0].mxu0
  %185 = vmatprep.mubr.f32.mxu0 0.0
  %186 = vmatmul.mubr.f32.gmra.mrb[0].mxu0 %v46
  %v187 = vpop.f32.mrb[0].mxu0
  %v188 = vadd.f32 %v94, %v187
  %v189 = vpop.f32.mrb[0].mxu0
  %190 = vmatprep.mubr.f32.mxu0 0.0
  %191 = vmatmul.mubr.f32.gmra.mrb[0].mxu0 %v47
  %v192 = vpop.f32.mrb[0].mxu0
  %v193 = vadd.f32 %v94, %v192
  %v194 = vpop.f32.mrb[0].mxu0
  %195 = vmatprep.mubr.f32.mxu0 0.0
  %196 = vmatmul.mubr.f32.gmra.mrb[0].mxu0 %v48
  %v197 = vpop.f32.mrb[0].mxu0
  %v198 = vadd.f32 %v94, %v197
  %v199 = vpop.f32.mrb[0].mxu0
  %200 = vmatprep.mubr.f32.mxu0 0.0
  %201 = vmatmul.mubr.f32.gmra.mrb[0].mxu0 %v49
  %v202 = vpop.f32.mrb[0].mxu0
  %v203 = vadd.f32 %v94, %v202
  %v204 = vpop.f32.mrb[0].mxu0
  %205 = vmatprep.mubr.f32.mxu0 0.0
  %206 = vmatmul.mubr.f32.gmra.mrb[0].mxu0 %v50
  %v207 = vpop.f32.mrb[0].mxu0
  %v208 = vadd.f32 %v94, %v207
  %v209 = vpop.f32.mrb[0].mxu0
  %210 = vmatprep.mubr.f32.mxu0 0.0
  %211 = vmatmul.mubr.f32.gmra.mrb[0].mxu0 %v51
  %v212 = vpop.f32.mrb[0].mxu0
  %v213 = vadd.f32 %v94, %v212
  %v214 = vpop.f32.mrb[0].mxu0
  %215 = vmatprep.mubr.f32.mxu0 0.0
  %216 = vmatmul.mubr.f32.gmra.mrb[0].mxu0 %v52
  %v217 = vpop.f32.mrb[0].mxu0
  %v218 = vadd.f32 %v94, %v217
  %v219 = vpop.f32.mrb[0].mxu0
  %220 = vmatprep.mubr.f32.mxu0 0.0
  %221 = vmatmul.mubr.f32.gmra.mrb[0].mxu0 %v53
  %v222 = vpop.f32.mrb[0].mxu0
  %v223 = vadd.f32 %v94, %v222
  %v224 = vpop.f32.mrb[0].mxu0
  %225 = vmatprep.mubr.f32.mxu0 0.0
  %226 = vmatmul.mubr.f32.gmra.mrb[0].mxu0 %v54
  %v227 = vpop.f32.mrb[0].mxu0
  %v228 = vadd.f32 %v94, %v227
  %v229 = vpop.f32.mrb[0].mxu0
  %230 = vmatprep.mubr.f32.mxu0 0.0
  %231 = vmatmul.mubr.f32.gmra.mrb[0].mxu0 %v55
  %v232 = vpop.f32.mrb[0].mxu0
  %v233 = vadd.f32 %v94, %v232
  %v234 = vpop.f32.mrb[0].mxu0
  %235 = vmatprep.mubr.f32.mxu0 0.0
  %236 = vmatmul.mubr.f32.gmra.mrb[0].mxu0 %v56
  %v237 = vpop.f32.mrb[0].mxu0
  %v238 = vadd.f32 %v94, %v237
  %v239 = vpop.f32.mrb[0].mxu0
  %240 = vmatprep.mubr.f32.mxu0 0.0
  %241 = vmatmul.mubr.f32.gmra.mrb[0].mxu0 %v57
  %v242 = vpop.f32.mrb[0].mxu0
  %v243 = vadd.f32 %v94, %v242
  %v244 = vpop.f32.mrb[0].mxu0
  %245 = vmatprep.mubr.f32.mxu0 0.0
  %246 = vmatmul.mubr.f32.gmra.mrb[0].mxu0 %v58
  %v247 = vpop.f32.mrb[0].mxu0
  %v248 = vadd.f32 %v94, %v247
  %v249 = vpop.f32.mrb[0].mxu0
  %250 = vmatprep.mubr.f32.mxu0 0.0
  %251 = vmatmul.mubr.f32.gmra.mrb[0].mxu0 %v59
  %v252 = vpop.f32.mrb[0].mxu0
  %v253 = vadd.f32 %v94, %v252
  %v254 = vpop.f32.mrb[0].mxu0
  %255 = vmatprep.mubr.f32.mxu0 0.0
  %256 = vmatmul.mubr.f32.gmra.mrb[0].mxu0 %v60
  %v257 = vpop.f32.mrb[0].mxu0
  %v258 = vadd.f32 %v94, %v257
  %v259 = vpop.f32.mrb[0].mxu0
  %260 = vmatprep.mubr.f32.mxu0 0.0
  %261 = vmatmul.mubr.f32.gmra.mrb[0].mxu0 %v61
  %v262 = vpop.f32.mrb[0].mxu0
  %v263 = vadd.f32 %v94, %v262
  %v264 = vpop.f32.mrb[0].mxu0
  %265 = vmatprep.mubr.f32.mxu0 0.0
  %266 = vmatmul.mubr.f32.gmra.mrb[0].mxu0 %v62
  %v267 = vpop.f32.mrb[0].mxu0
  %v268 = vadd.f32 %v94, %v267
  %v269 = vpop.f32.mrb[0].mxu0
  %270 = vmatprep.mubr.f32.mxu0 0.0
  %271 = vmatmul.mubr.f32.gmra.mrb[0].mxu0 %v63
  %v272 = vpop.f32.mrb[0].mxu0
  %v273 = vadd.f32 %v94, %v272
  %v274 = vpop.f32.mrb[0].mxu0
  %275 = vmatprep.mubr.f32.mxu0 0.0
  %276 = vmatmul.mubr.f32.gmra.mrb[0].mxu0 %v64
  %v277 = vpop.f32.mrb[0].mxu0
  %v278 = vadd.f32 %v94, %v277
  %v279 = vpop.f32.mrb[0].mxu0
  %280 = vmatprep.mubr.f32.mxu0 0.0
  %281 = vmatmul.mubr.f32.gmra.mrb[0].mxu0 %v65
  %v282 = vpop.f32.mrb[0].mxu0
  %v283 = vadd.f32 %v94, %v282
  %v284 = vpop.f32.mrb[0].mxu0
  %285 = vmatprep.mubr.f32.mxu0 0.0
  %286 = vmatmul.mubr.f32.gmra.mrb[0].mxu0 %v66
  %v287 = vpop.f32.mrb[0].mxu0
  %v288 = vadd.f32 %v94, %v287
  %v289 = vpop.f32.mrb[0].mxu0
  %290 = vmatprep.mubr.f32.mxu0 0.0
  %291 = vmatmul.mubr.f32.gmra.mrb[0].mxu0 %v67
  %v292 = vpop.f32.mrb[0].mxu0
  %v293 = vadd.f32 %v94, %v292
  %v294 = vpop.f32.mrb[0].mxu0
  %295 = vmatprep.mubr.f32.mxu0 0.0
  %296 = vmatmul.mubr.f32.gmra.mrb[0].mxu0 %v68
  %v297 = vpop.f32.mrb[0].mxu0
  %v298 = vadd.f32 %v94, %v297
  %v299 = vpop.f32.mrb[0].mxu0
  %300 = vmatprep.mubr.f32.mxu0 0.0
  %301 = vmatmul.mubr.f32.gmra.mrb[0].mxu0 %v69
  %v302 = vpop.f32.mrb[0].mxu0
  %v303 = vadd.f32 %v94, %v302
  %v304 = vpop.f32.mrb[0].mxu0
  %305 = vmatprep.mubr.f32.mxu0 0.0
  %306 = vmatmul.mubr.f32.gmra.mrb[0].mxu0 %v70
  %v307 = vpop.f32.mrb[0].mxu0
  %v308 = vadd.f32 %v94, %v307
  %v309 = vpop.f32.mrb[0].mxu0
  %310 = vmatprep.mubr.f32.mxu0 0.0
  %311 = vmatmul.mubr.f32.gmra.mrb[0].mxu0 %v71
  %v312 = vpop.f32.mrb[0].mxu0
  %v313 = vadd.f32 %v94, %v312
  %v314 = vpop.f32.mrb[0].mxu0
  %315 = vmatprep.mubr.f32.mxu0 0.0
  %316 = vmatmul.mubr.f32.gmra.mrb[0].mxu0 %v72
  %v317 = vpop.f32.mrb[0].mxu0
  %v318 = vadd.f32 %v94, %v317
  %v319 = vpop.f32.mrb[0].mxu0
  %320 = vdwg.mxu0
  %v321 = vld [vmem:[%s3] sm:$0xff]
  %v322 = vld [vmem:[%s3 + $0x8] sm:$0xff]
  %v323 = vld [vmem:[%s3 + $0x10] sm:$0xff]
  %v324 = vld [vmem:[%s3 + $0x18] sm:$0xff]
  %v325 = vld [vmem:[%s3 + $0x20] sm:$0xff]
  %v326 = vld [vmem:[%s3 + $0x28] sm:$0xff]
  %v327 = vld [vmem:[%s3 + $0x30] sm:$0xff]
  %v328 = vld [vmem:[%s3 + $0x38] sm:$0xff]
  %v329 = vld [vmem:[%s3 + $0x40] sm:$0xff]
  %v330 = vld [vmem:[%s3 + $0x48] sm:$0xff]
  %v331 = vld [vmem:[%s3 + $0x50] sm:$0xff]
  %v332 = vld [vmem:[%s3 + $0x58] sm:$0xff]
  %v333 = vld [vmem:[%s3 + $0x60] sm:$0xff]
  %v334 = vld [vmem:[%s3 + $0x68] sm:$0xff]
  %v335 = vld [vmem:[%s3 + $0x70] sm:$0xff]
  %v336 = vld [vmem:[%s3 + $0x78] sm:$0xff]
  %v337 = vld [vmem:[%s4] sm:$0x1]
  %v339 = vlaneseq
  %v340 = vshrl.u32 %v339, 7
  %v341 = vsub.s32 0, %v340
  %v342 = vrot.slane %v337, %v341
  %344 = vmatprep.subr.mxu0 0.0
  %345 = vmatpush1.msra.mxu0 %v321
  %346 = vmatprep.subr.mxu0 0.0
  %347 = vmatpush1.msra.mxu0 %v322
  %348 = vmatprep.subr.mxu0 0.0
  %349 = vmatpush1.msra.mxu0 %v323
  %350 = vmatprep.subr.mxu0 0.0
  %351 = vmatpush1.msra.mxu0 %v324
  %352 = vmatprep.subr.mxu0 0.0
  %353 = vmatpush1.msra.mxu0 %v325
  %354 = vmatprep.subr.mxu0 0.0
  %355 = vmatpush1.msra.mxu0 %v326
  %356 = vmatprep.subr.mxu0 0.0
  %357 = vmatpush1.msra.mxu0 %v327
  %358 = vmatprep.subr.mxu0 0.0
  %359 = vmatpush1.msra.mxu0 %v328
  %360 = vmatprep.subr.mxu0 0.0
  %361 = vmatpush1.msra.mxu0 %v329
  %362 = vmatprep.subr.mxu0 0.0
  %363 = vmatpush1.msra.mxu0 %v330
  %364 = vmatprep.subr.mxu0 0.0
  %365 = vmatpush1.msra.mxu0 %v331
  %366 = vmatprep.subr.mxu0 0.0
  %367 = vmatpush1.msra.mxu0 %v332
  %368 = vmatprep.subr.mxu0 0.0
  %369 = vmatpush1.msra.mxu0 %v333
  %370 = vmatprep.subr.mxu0 0.0
  %371 = vmatpush1.msra.mxu0 %v334
  %372 = vmatprep.subr.mxu0 0.0
  %373 = vmatpush1.msra.mxu0 %v335
  %374 = vmatprep.subr.mxu0 0.0
  %375 = vmatpush1.msra.mxu0 %v336
  %376 = vmatprep.subr.mxu0 0.0
  %377 = vmatpush1.msra.mxu0 0.0
  %378 = vmatprep.subr.mxu0 0.0
  %379 = vmatpush1.msra.mxu0 0.0
  %380 = vmatprep.subr.mxu0 0.0
  %381 = vmatpush1.msra.mxu0 0.0
  %382 = vmatprep.subr.mxu0 0.0
  %383 = vmatpush1.msra.mxu0 0.0
  %384 = vmatprep.subr.mxu0 0.0
  %385 = vmatpush1.msra.mxu0 0.0
  %386 = vmatprep.subr.mxu0 0.0
  %387 = vmatpush1.msra.mxu0 0.0
  %388 = vmatprep.subr.mxu0 0.0
  %389 = vmatpush1.msra.mxu0 0.0
  %390 = vmatprep.subr.mxu0 0.0
  %391 = vmatpush1.msra.mxu0 0.0
  %392 = vmatprep.subr.mxu0 0.0
  %393 = vmatpush1.msra.mxu0 0.0
  %394 = vmatprep.subr.mxu0 0.0
  %395 = vmatpush1.msra.mxu0 0.0
  %396 = vmatprep.subr.mxu0 0.0
  %397 = vmatpush1.msra.mxu0 0.0
  %398 = vmatprep.subr.mxu0 0.0
  %399 = vmatpush1.msra.mxu0 0.0
  %400 = vmatprep.subr.mxu0 0.0
  %401 = vmatpush1.msra.mxu0 0.0
  %402 = vmatprep.subr.mxu0 0.0
  %403 = vmatpush1.msra.mxu0 0.0
  %404 = vmatprep.subr.mxu0 0.0
  %405 = vmatpush1.msra.mxu0 0.0
  %406 = vmatprep.subr.mxu0 0.0
  %407 = vmatpush1.msra.mxu0 0.0
  %408 = vmatprep.mubr.f32.mxu0 0.0
  %409 = vmatmul.mubr.f32.gmra.mrb[0].mxu0 %v163
  %v410 = vpop.f32.mrb[0].mxu0
  %v411 = vadd.f32 %v342, %v410
  %v412 = vpop.f32.mrb[0].mxu0
  %413 = vmatprep.mubr.f32.mxu0 0.0
  %414 = vmatmul.mubr.f32.gmra.mrb[0].mxu0 %v168
  %v415 = vpop.f32.mrb[0].mxu0
  %v416 = vadd.f32 %v342, %v415
  %v417 = vpop.f32.mrb[0].mxu0
  %418 = vmatprep.mubr.f32.mxu0 0.0
  %419 = vmatmul.mubr.f32.gmra.mrb[0].mxu0 %v173
  %v420 = vpop.f32.mrb[0].mxu0
  %v421 = vadd.f32 %v342, %v420
  %v422 = vpop.f32.mrb[0].mxu0
  %423 = vmatprep.mubr.f32.mxu0 0.0
  %424 = vmatmul.mubr.f32.gmra.mrb[0].mxu0 %v178
  %v425 = vpop.f32.mrb[0].mxu0
  %v426 = vadd.f32 %v342, %v425
  %v427 = vpop.f32.mrb[0].mxu0
  %428 = vmatprep.mubr.f32.mxu0 0.0
  %429 = vmatmul.mubr.f32.gmra.mrb[0].mxu0 %v183
  %v430 = vpop.f32.mrb[0].mxu0
  %v431 = vadd.f32 %v342, %v430
  %v432 = vpop.f32.mrb[0].mxu0
  %433 = vmatprep.mubr.f32.mxu0 0.0
  %434 = vmatmul.mubr.f32.gmra.mrb[0].mxu0 %v188
  %v435 = vpop.f32.mrb[0].mxu0
  %v436 = vadd.f32 %v342, %v435
  %v437 = vpop.f32.mrb[0].mxu0
  %438 = vmatprep.mubr.f32.mxu0 0.0
  %439 = vmatmul.mubr.f32.gmra.mrb[0].mxu0 %v193
  %v440 = vpop.f32.mrb[0].mxu0
  %v441 = vadd.f32 %v342, %v440
  %v442 = vpop.f32.mrb[0].mxu0
  %443 = vmatprep.mubr.f32.mxu0 0.0
  %444 = vmatmul.mubr.f32.gmra.mrb[0].mxu0 %v198
  %v445 = vpop.f32.mrb[0].mxu0
  %v446 = vadd.f32 %v342, %v445
  %v447 = vpop.f32.mrb[0].mxu0
  %448 = vmatprep.mubr.f32.mxu0 0.0
  %449 = vmatmul.mubr.f32.gmra.mrb[0].mxu0 %v203
  %v450 = vpop.f32.mrb[0].mxu0
  %v451 = vadd.f32 %v342, %v450
  %v452 = vpop.f32.mrb[0].mxu0
  %453 = vmatprep.mubr.f32.mxu0 0.0
  %454 = vmatmul.mubr.f32.gmra.mrb[0].mxu0 %v208
  %v455 = vpop.f32.mrb[0].mxu0
  %v456 = vadd.f32 %v342, %v455
  %v457 = vpop.f32.mrb[0].mxu0
  %458 = vmatprep.mubr.f32.mxu0 0.0
  %459 = vmatmul.mubr.f32.gmra.mrb[0].mxu0 %v213
  %v460 = vpop.f32.mrb[0].mxu0
  %v461 = vadd.f32 %v342, %v460
  %v462 = vpop.f32.mrb[0].mxu0
  %463 = vmatprep.mubr.f32.mxu0 0.0
  %464 = vmatmul.mubr.f32.gmra.mrb[0].mxu0 %v218
  %v465 = vpop.f32.mrb[0].mxu0
  %v466 = vadd.f32 %v342, %v465
  %v467 = vpop.f32.mrb[0].mxu0
  %468 = vmatprep.mubr.f32.mxu0 0.0
  %469 = vmatmul.mubr.f32.gmra.mrb[0].mxu0 %v223
  %v470 = vpop.f32.mrb[0].mxu0
  %v471 = vadd.f32 %v342, %v470
  %v472 = vpop.f32.mrb[0].mxu0
  %473 = vmatprep.mubr.f32.mxu0 0.0
  %474 = vmatmul.mubr.f32.gmra.mrb[0].mxu0 %v228
  %v475 = vpop.f32.mrb[0].mxu0
  %v476 = vadd.f32 %v342, %v475
  %v477 = vpop.f32.mrb[0].mxu0
  %478 = vmatprep.mubr.f32.mxu0 0.0
  %479 = vmatmul.mubr.f32.gmra.mrb[0].mxu0 %v233
  %v480 = vpop.f32.mrb[0].mxu0
  %v481 = vadd.f32 %v342, %v480
  %v482 = vpop.f32.mrb[0].mxu0
  %483 = vmatprep.mubr.f32.mxu0 0.0
  %484 = vmatmul.mubr.f32.gmra.mrb[0].mxu0 %v238
  %v485 = vpop.f32.mrb[0].mxu0
  %v486 = vadd.f32 %v342, %v485
  %v487 = vpop.f32.mrb[0].mxu0
  %488 = vmatprep.mubr.f32.mxu0 0.0
  %489 = vmatmul.mubr.f32.gmra.mrb[0].mxu0 %v243
  %v490 = vpop.f32.mrb[0].mxu0
  %v491 = vadd.f32 %v342, %v490
  %v492 = vpop.f32.mrb[0].mxu0
  %493 = vmatprep.mubr.f32.mxu0 0.0
  %494 = vmatmul.mubr.f32.gmra.mrb[0].mxu0 %v248
  %v495 = vpop.f32.mrb[0].mxu0
  %v496 = vadd.f32 %v342, %v495
  %v497 = vpop.f32.mrb[0].mxu0
  %498 = vmatprep.mubr.f32.mxu0 0.0
  %499 = vmatmul.mubr.f32.gmra.mrb[0].mxu0 %v253
  %v500 = vpop.f32.mrb[0].mxu0
  %v501 = vadd.f32 %v342, %v500
  %v502 = vpop.f32.mrb[0].mxu0
  %503 = vmatprep.mubr.f32.mxu0 0.0
  %504 = vmatmul.mubr.f32.gmra.mrb[0].mxu0 %v258
  %v505 = vpop.f32.mrb[0].mxu0
  %v506 = vadd.f32 %v342, %v505
  %v507 = vpop.f32.mrb[0].mxu0
  %508 = vmatprep.mubr.f32.mxu0 0.0
  %509 = vmatmul.mubr.f32.gmra.mrb[0].mxu0 %v263
  %v510 = vpop.f32.mrb[0].mxu0
  %v511 = vadd.f32 %v342, %v510
  %v512 = vpop.f32.mrb[0].mxu0
  %513 = vmatprep.mubr.f32.mxu0 0.0
  %514 = vmatmul.mubr.f32.gmra.mrb[0].mxu0 %v268
  %v515 = vpop.f32.mrb[0].mxu0
  %v516 = vadd.f32 %v342, %v515
  %v517 = vpop.f32.mrb[0].mxu0
  %518 = vmatprep.mubr.f32.mxu0 0.0
  %519 = vmatmul.mubr.f32.gmra.mrb[0].mxu0 %v273
  %v520 = vpop.f32.mrb[0].mxu0
  %v521 = vadd.f32 %v342, %v520
  %v522 = vpop.f32.mrb[0].mxu0
  %523 = vmatprep.mubr.f32.mxu0 0.0
  %524 = vmatmul.mubr.f32.gmra.mrb[0].mxu0 %v278
  %v525 = vpop.f32.mrb[0].mxu0
  %v526 = vadd.f32 %v342, %v525
  %v527 = vpop.f32.mrb[0].mxu0
  %528 = vmatprep.mubr.f32.mxu0 0.0
  %529 = vmatmul.mubr.f32.gmra.mrb[0].mxu0 %v283
  %v530 = vpop.f32.mrb[0].mxu0
  %v531 = vadd.f32 %v342, %v530
  %v532 = vpop.f32.mrb[0].mxu0
  %533 = vmatprep.mubr.f32.mxu0 0.0
  %534 = vmatmul.mubr.f32.gmra.mrb[0].mxu0 %v288
  %v535 = vpop.f32.mrb[0].mxu0
  %v536 = vadd.f32 %v342, %v535
  %v537 = vpop.f32.mrb[0].mxu0
  %538 = vmatprep.mubr.f32.mxu0 0.0
  %539 = vmatmul.mubr.f32.gmra.mrb[0].mxu0 %v293
  %v540 = vpop.f32.mrb[0].mxu0
  %v541 = vadd.f32 %v342, %v540
  %v542 = vpop.f32.mrb[0].mxu0
  %543 = vmatprep.mubr.f32.mxu0 0.0
  %544 = vmatmul.mubr.f32.gmra.mrb[0].mxu0 %v298
  %v545 = vpop.f32.mrb[0].mxu0
  %v546 = vadd.f32 %v342, %v545
  %v547 = vpop.f32.mrb[0].mxu0
  %548 = vmatprep.mubr.f32.mxu0 0.0
  %549 = vmatmul.mubr.f32.gmra.mrb[0].mxu0 %v303
  %v550 = vpop.f32.mrb[0].mxu0
  %v551 = vadd.f32 %v342, %v550
  %v552 = vpop.f32.mrb[0].mxu0
  %553 = vmatprep.mubr.f32.mxu0 0.0
  %554 = vmatmul.mubr.f32.gmra.mrb[0].mxu0 %v308
  %v555 = vpop.f32.mrb[0].mxu0
  %v556 = vadd.f32 %v342, %v555
  %v557 = vpop.f32.mrb[0].mxu0
  %558 = vmatprep.mubr.f32.mxu0 0.0
  %559 = vmatmul.mubr.f32.gmra.mrb[0].mxu0 %v313
  %v560 = vpop.f32.mrb[0].mxu0
  %v561 = vadd.f32 %v342, %v560
  %v562 = vpop.f32.mrb[0].mxu0
  %563 = vmatprep.mubr.f32.mxu0 0.0
  %564 = vmatmul.mubr.f32.gmra.mrb[0].mxu0 %v318
  %v565 = vpop.f32.mrb[0].mxu0
  %v566 = vadd.f32 %v342, %v565
  %v567 = vpop.f32.mrb[0].mxu0
  %568 = vdwg.mxu0
  %v569 = vld [vmem:[%s5] sm:$0x1]
  %v570 = vld [vmem:[%s6] sm:$0x1]
  %v571 = vld [vmem:[%s7] sm:$0xff]
  %v572 = vld [vmem:[%s7 + $0x8] sm:$0xff]
  %v573 = vld [vmem:[%s7 + $0x10] sm:$0xff]
  %v574 = vld [vmem:[%s7 + $0x18] sm:$0xff]
  %v575 = vld [vmem:[%s7 + $0x20] sm:$0xff]
  %v576 = vld [vmem:[%s7 + $0x28] sm:$0xff]
  %v577 = vld [vmem:[%s7 + $0x30] sm:$0xff]
  %v578 = vld [vmem:[%s7 + $0x38] sm:$0xff]
  %v579 = vld [vmem:[%s7 + $0x40] sm:$0xff]
  %v580 = vld [vmem:[%s7 + $0x48] sm:$0xff]
  %v581 = vld [vmem:[%s7 + $0x50] sm:$0xff]
  %v582 = vld [vmem:[%s7 + $0x58] sm:$0xff]
  %v583 = vld [vmem:[%s7 + $0x60] sm:$0xff]
  %v584 = vld [vmem:[%s7 + $0x68] sm:$0xff]
  %v585 = vld [vmem:[%s7 + $0x70] sm:$0xff]
  %v586 = vld [vmem:[%s7 + $0x78] sm:$0xff]
  %v587 = vld [vmem:[%s8] sm:$0xff]
  %v588 = vld [vmem:[%s8 + $0x8] sm:$0xff]
  %v589 = vld [vmem:[%s8 + $0x10] sm:$0xff]
  %v590 = vld [vmem:[%s8 + $0x18] sm:$0xff]
  %v591 = vld [vmem:[%s8 + $0x20] sm:$0xff]
  %v592 = vld [vmem:[%s8 + $0x28] sm:$0xff]
  %v593 = vld [vmem:[%s8 + $0x30] sm:$0xff]
  %v594 = vld [vmem:[%s8 + $0x38] sm:$0xff]
  %v595 = vld [vmem:[%s8 + $0x40] sm:$0xff]
  %v596 = vld [vmem:[%s8 + $0x48] sm:$0xff]
  %v597 = vld [vmem:[%s8 + $0x50] sm:$0xff]
  %v598 = vld [vmem:[%s8 + $0x58] sm:$0xff]
  %v599 = vld [vmem:[%s8 + $0x60] sm:$0xff]
  %v600 = vld [vmem:[%s8 + $0x68] sm:$0xff]
  %v601 = vld [vmem:[%s8 + $0x70] sm:$0xff]
  %v602 = vld [vmem:[%s8 + $0x78] sm:$0xff]
  %603 = vmatprep.subr.mxu0 0.0
  %604 = vmatpush1.msra.mxu0 %v411
  %605 = vmatprep.subr.mxu0 0.0
  %606 = vmatpush1.msra.mxu0 %v416
  %607 = vmatprep.subr.mxu0 0.0
  %608 = vmatpush1.msra.mxu0 %v421
  %609 = vmatprep.subr.mxu0 0.0
  %610 = vmatpush1.msra.mxu0 %v426
  %611 = vmatprep.subr.mxu0 0.0
  %612 = vmatpush1.msra.mxu0 %v431
  %613 = vmatprep.subr.mxu0 0.0
  %614 = vmatpush1.msra.mxu0 %v436
  %615 = vmatprep.subr.mxu0 0.0
  %616 = vmatpush1.msra.mxu0 %v441
  %617 = vmatprep.subr.mxu0 0.0
  %618 = vmatpush1.msra.mxu0 %v446
  %619 = vmatprep.subr.mxu0 0.0
  %620 = vmatpush1.msra.mxu0 %v451
  %621 = vmatprep.subr.mxu0 0.0
  %622 = vmatpush1.msra.mxu0 %v456
  %623 = vmatprep.subr.mxu0 0.0
  %624 = vmatpush1.msra.mxu0 %v461
  %625 = vmatprep.subr.mxu0 0.0
  %626 = vmatpush1.msra.mxu0 %v466
  %627 = vmatprep.subr.mxu0 0.0
  %628 = vmatpush1.msra.mxu0 %v471
  %629 = vmatprep.subr.mxu0 0.0
  %630 = vmatpush1.msra.mxu0 %v476
  %631 = vmatprep.subr.mxu0 0.0
  %632 = vmatpush1.msra.mxu0 %v481
  %633 = vmatprep.subr.mxu0 0.0
  %634 = vmatpush1.msra.mxu0 %v486
  %635 = vmatprep.subr.mxu0 0.0
  %636 = vmatpush1.msra.mxu0 %v491
  %637 = vmatprep.subr.mxu0 0.0
  %638 = vmatpush1.msra.mxu0 %v496
  %639 = vmatprep.subr.mxu0 0.0
  %640 = vmatpush1.msra.mxu0 %v501
  %641 = vmatprep.subr.mxu0 0.0
  %642 = vmatpush1.msra.mxu0 %v506
  %643 = vmatprep.subr.mxu0 0.0
  %644 = vmatpush1.msra.mxu0 %v511
  %645 = vmatprep.subr.mxu0 0.0
  %646 = vmatpush1.msra.mxu0 %v516
  %647 = vmatprep.subr.mxu0 0.0
  %648 = vmatpush1.msra.mxu0 %v521
  %649 = vmatprep.subr.mxu0 0.0
  %650 = vmatpush1.msra.mxu0 %v526
  %651 = vmatprep.subr.mxu0 0.0
  %652 = vmatpush1.msra.mxu0 %v531
  %653 = vmatprep.subr.mxu0 0.0
  %654 = vmatpush1.msra.mxu0 %v536
  %655 = vmatprep.subr.mxu0 0.0
  %656 = vmatpush1.msra.mxu0 %v541
  %657 = vmatprep.subr.mxu0 0.0
  %658 = vmatpush1.msra.mxu0 %v546
  %659 = vmatprep.subr.mxu0 0.0
  %660 = vmatpush1.msra.mxu0 %v551
  %661 = vmatprep.subr.mxu0 0.0
  %662 = vmatpush1.msra.mxu0 %v556
  %663 = vmatprep.subr.mxu0 0.0
  %664 = vmatpush1.msra.mxu0 %v561
  %665 = vmatprep.subr.mxu0 0.0
  %666 = vmatpush1.msra.mxu0 %v566
  %667 = vmatprep.mubr.f32.mxu0 1.0
  %668 = vmatmul.mubr.f32.gmra.mrb[0].mxu0 1.0
  %v669 = vpop.f32.mrb[0].mxu0
  %v670 = vadd.f32 0.0, %v669
  %v671 = vpop.f32.mrb[0].mxu0
  %672 = vdwg.mxu0
  %v673 = vmul.f32 %v411, %v411
  %v674 = vmul.f32 %v416, %v416
  %v675 = vmul.f32 %v421, %v421
  %v676 = vmul.f32 %v426, %v426
  %v677 = vmul.f32 %v431, %v431
  %v678 = vmul.f32 %v436, %v436
  %v679 = vmul.f32 %v441, %v441
  %v680 = vmul.f32 %v446, %v446
  %v681 = vmul.f32 %v451, %v451
  %v682 = vmul.f32 %v456, %v456
  %v683 = vmul.f32 %v461, %v461
  %v684 = vmul.f32 %v466, %v466
  %v685 = vmul.f32 %v471, %v471
  %v686 = vmul.f32 %v476, %v476
  %v687 = vmul.f32 %v481, %v481
  %v688 = vmul.f32 %v486, %v486
  %v689 = vmul.f32 %v491, %v491
  %v690 = vmul.f32 %v496, %v496
  %v691 = vmul.f32 %v501, %v501
  %v692 = vmul.f32 %v506, %v506
  %v693 = vmul.f32 %v511, %v511
  %v694 = vmul.f32 %v516, %v516
  %v695 = vmul.f32 %v521, %v521
  %v696 = vmul.f32 %v526, %v526
  %v697 = vmul.f32 %v531, %v531
  %v698 = vmul.f32 %v536, %v536
  %v699 = vmul.f32 %v541, %v541
  %v700 = vmul.f32 %v546, %v546
  %v701 = vmul.f32 %v551, %v551
  %v702 = vmul.f32 %v556, %v556
  %v703 = vmul.f32 %v561, %v561
  %v704 = vmul.f32 %v566, %v566
  %705 = vmatprep.subr.mxu0 0.0
  %706 = vmatpush1.msra.mxu0 %v673
  %707 = vmatprep.subr.mxu0 0.0
  %708 = vmatpush1.msra.mxu0 %v674
  %709 = vmatprep.subr.mxu0 0.0
  %710 = vmatpush1.msra.mxu0 %v675
  %711 = vmatprep.subr.mxu0 0.0
  %712 = vmatpush1.msra.mxu0 %v676
  %713 = vmatprep.subr.mxu0 0.0
  %714 = vmatpush1.msra.mxu0 %v677
  %715 = vmatprep.subr.mxu0 0.0
  %716 = vmatpush1.msra.mxu0 %v678
  %717 = vmatprep.subr.mxu0 0.0
  %718 = vmatpush1.msra.mxu0 %v679
  %719 = vmatprep.subr.mxu0 0.0
  %720 = vmatpush1.msra.mxu0 %v680
  %721 = vmatprep.subr.mxu0 0.0
  %722 = vmatpush1.msra.mxu0 %v681
  %723 = vmatprep.subr.mxu0 0.0
  %724 = vmatpush1.msra.mxu0 %v682
  %725 = vmatprep.subr.mxu0 0.0
  %726 = vmatpush1.msra.mxu0 %v683
  %727 = vmatprep.subr.mxu0 0.0
  %728 = vmatpush1.msra.mxu0 %v684
  %729 = vmatprep.subr.mxu0 0.0
  %730 = vmatpush1.msra.mxu0 %v685
  %731 = vmatprep.subr.mxu0 0.0
  %732 = vmatpush1.msra.mxu0 %v686
  %733 = vmatprep.subr.mxu0 0.0
  %734 = vmatpush1.msra.mxu0 %v687
  %735 = vmatprep.subr.mxu0 0.0
  %736 = vmatpush1.msra.mxu0 %v688
  %737 = vmatprep.subr.mxu0 0.0
  %738 = vmatpush1.msra.mxu0 %v689
  %739 = vmatprep.subr.mxu0 0.0
  %740 = vmatpush1.msra.mxu0 %v690
  %741 = vmatprep.subr.mxu0 0.0
  %742 = vmatpush1.msra.mxu0 %v691
  %743 = vmatprep.subr.mxu0 0.0
  %744 = vmatpush1.msra.mxu0 %v692
  %745 = vmatprep.subr.mxu0 0.0
  %746 = vmatpush1.msra.mxu0 %v693
  %747 = vmatprep.subr.mxu0 0.0
  %748 = vmatpush1.msra.mxu0 %v694
  %749 = vmatprep.subr.mxu0 0.0
  %750 = vmatpush1.msra.mxu0 %v695
  %751 = vmatprep.subr.mxu0 0.0
  %752 = vmatpush1.msra.mxu0 %v696
  %753 = vmatprep.subr.mxu0 0.0
  %754 = vmatpush1.msra.mxu0 %v697
  %755 = vmatprep.subr.mxu0 0.0
  %756 = vmatpush1.msra.mxu0 %v698
  %757 = vmatprep.subr.mxu0 0.0
  %758 = vmatpush1.msra.mxu0 %v699
  %759 = vmatprep.subr.mxu0 0.0
  %760 = vmatpush1.msra.mxu0 %v700
  %761 = vmatprep.subr.mxu0 0.0
  %762 = vmatpush1.msra.mxu0 %v701
  %763 = vmatprep.subr.mxu0 0.0
  %764 = vmatpush1.msra.mxu0 %v702
  %765 = vmatprep.subr.mxu0 0.0
  %766 = vmatpush1.msra.mxu0 %v703
  %767 = vmatprep.subr.mxu0 0.0
  %768 = vmatpush1.msra.mxu0 %v704
  %769 = vmatprep.mubr.f32.mxu0 1.0
  %770 = vmatmul.mubr.f32.gmra.mrb[0].mxu0 1.0
  %v771 = vpop.f32.mrb[0].mxu0
  %v772 = vadd.f32 0.0, %v771
  %v773 = vpop.f32.mrb[0].mxu0
  %774 = vdwg.mxu0
  %v776 = vrot.slane %v772, 7
  %vm778 = vcmask 1040384
  %v779 = vsel %vm778, %v670, %v776
  %780 = vmatprep.subr.mxu0 0.0
  %781 = vmatpush1.msra.mxu0 %v571
  %782 = vmatprep.subr.mxu0 0.0
  %783 = vmatpush1.msra.mxu0 %v572
  %784 = vmatprep.subr.mxu0 0.0
  %785 = vmatpush1.msra.mxu0 %v573
  %786 = vmatprep.subr.mxu0 0.0
  %787 = vmatpush1.msra.mxu0 %v574
  %788 = vmatprep.subr.mxu0 0.0
  %789 = vmatpush1.msra.mxu0 %v575
  %790 = vmatprep.subr.mxu0 0.0
  %791 = vmatpush1.msra.mxu0 %v576
  %792 = vmatprep.subr.mxu0 0.0
  %793 = vmatpush1.msra.mxu0 %v577
  %794 = vmatprep.subr.mxu0 0.0
  %795 = vmatpush1.msra.mxu0 %v578
  %796 = vmatprep.subr.mxu0 0.0
  %797 = vmatpush1.msra.mxu0 %v579
  %798 = vmatprep.subr.mxu0 0.0
  %799 = vmatpush1.msra.mxu0 %v580
  %800 = vmatprep.subr.mxu0 0.0
  %801 = vmatpush1.msra.mxu0 %v581
  %802 = vmatprep.subr.mxu0 0.0
  %803 = vmatpush1.msra.mxu0 %v582
  %804 = vmatprep.subr.mxu0 0.0
  %805 = vmatpush1.msra.mxu0 %v583
  %806 = vmatprep.subr.mxu0 0.0
  %807 = vmatpush1.msra.mxu0 %v584
  %808 = vmatprep.subr.mxu0 0.0
  %809 = vmatpush1.msra.mxu0 %v585
  %810 = vmatprep.subr.mxu0 0.0
  %811 = vmatpush1.msra.mxu0 %v586
  %812 = vmatprep.subr.mxu0 0.0
  %813 = vmatpush1.msra.mxu0 0.0
  %814 = vmatprep.subr.mxu0 0.0
  %815 = vmatpush1.msra.mxu0 0.0
  %816 = vmatprep.subr.mxu0 0.0
  %817 = vmatpush1.msra.mxu0 0.0
  %818 = vmatprep.subr.mxu0 0.0
  %819 = vmatpush1.msra.mxu0 0.0
  %820 = vmatprep.subr.mxu0 0.0
  %821 = vmatpush1.msra.mxu0 0.0
  %822 = vmatprep.subr.mxu0 0.0
  %823 = vmatpush1.msra.mxu0 0.0
  %824 = vmatprep.subr.mxu0 0.0
  %825 = vmatpush1.msra.mxu0 0.0
  %826 = vmatprep.subr.mxu0 0.0
  %827 = vmatpush1.msra.mxu0 0.0
  %828 = vmatprep.subr.mxu0 0.0
  %829 = vmatpush1.msra.mxu0 0.0
  %830 = vmatprep.subr.mxu0 0.0
  %831 = vmatpush1.msra.mxu0 0.0
  %832 = vmatprep.subr.mxu0 0.0
  %833 = vmatpush1.msra.mxu0 0.0
  %834 = vmatprep.subr.mxu0 0.0
  %835 = vmatpush1.msra.mxu0 0.0
  %836 = vmatprep.subr.mxu0 0.0
  %837 = vmatpush1.msra.mxu0 0.0
  %838 = vmatprep.subr.mxu0 0.0
  %839 = vmatpush1.msra.mxu0 0.0
  %840 = vmatprep.subr.mxu0 0.0
  %841 = vmatpush1.msra.mxu0 0.0
  %842 = vmatprep.subr.mxu0 0.0
  %843 = vmatpush1.msra.mxu0 0.0
  %844 = vmatprep.mubr.f32.mxu0 0.0
  %845 = vmatmul.mubr.f32.gmra.mrb[0].mxu0 %v779
  %v846 = vpop.f32.mrb[0].mxu0
  %v847 = vadd.f32 0.0, %v846
  %v848 = vpop.f32.mrb[0].mxu0
  %849 = vdwg.mxu0
  %v850 = vmul.f32 %v847, 0.00048828125
  %v851 = vmul.f32 %v850, %v850
  %v853 = vrot.slane %v851, 7
  %v855 = vsub.f32 %v850, %v853
  %v856 = vmax.f32 %v855, 0.0
  %v857 = vadd.f32 %v856, 1e-05
  %v858 = vrsqrt.pop %v857
  %v861 = vunpack.c.l.s4 1966171168
  %v862 = vunpack.c.0.s8 %v861
  %v863 = vlaneseq
  %v864 = vshrl.u32 %v863, 7
  %v865 = vsub.s32 %v862, %v864
  %v866 = vrot.slane %v858, %v865
  %v867 = vcombine.high %v866, %v866
  %v869 = vunpack.c.l.s4 1966171168
  %v870 = vunpack.c.0.s8 %v869
  %v871 = vlaneseq
  %v872 = vshrl.u32 %v871, 7
  %v873 = vsub.s32 %v870, %v872
  %v874 = vrot.slane %v867, %v873
  %v876 = vmul.f32 %v569, %v874
  %v877 = vmul.f32 %v850, %v876
  %v878 = vsub.f32 %v570, %v877
  %v880 = vlaneseq
  %v881 = vshrl.u32 %v880, 7
  %v882 = vsub.s32 0, %v881
  %v883 = vrot.slane %v878, %v882
  %v885 = vsel %vm778, %v876, %v883
  %886 = vmatprep.subr.mxu0 0.0
  %887 = vmatpush1.msra.mxu0 %v587
  %888 = vmatprep.subr.mxu0 0.0
  %889 = vmatpush1.msra.mxu0 %v588
  %890 = vmatprep.subr.mxu0 0.0
  %891 = vmatpush1.msra.mxu0 %v589
  %892 = vmatprep.subr.mxu0 0.0
  %893 = vmatpush1.msra.mxu0 %v590
  %894 = vmatprep.subr.mxu0 0.0
  %895 = vmatpush1.msra.mxu0 %v591
  %896 = vmatprep.subr.mxu0 0.0
  %897 = vmatpush1.msra.mxu0 %v592
  %898 = vmatprep.subr.mxu0 0.0
  %899 = vmatpush1.msra.mxu0 %v593
  %900 = vmatprep.subr.mxu0 0.0
  %901 = vmatpush1.msra.mxu0 %v594
  %902 = vmatprep.subr.mxu0 0.0
  %903 = vmatpush1.msra.mxu0 %v595
  %904 = vmatprep.subr.mxu0 0.0
  %905 = vmatpush1.msra.mxu0 %v596
  %906 = vmatprep.subr.mxu0 0.0
  %907 = vmatpush1.msra.mxu0 %v597
  %908 = vmatprep.subr.mxu0 0.0
  %909 = vmatpush1.msra.mxu0 %v598
  %910 = vmatprep.subr.mxu0 0.0
  %911 = vmatpush1.msra.mxu0 %v599
  %912 = vmatprep.subr.mxu0 0.0
  %913 = vmatpush1.msra.mxu0 %v600
  %914 = vmatprep.subr.mxu0 0.0
  %915 = vmatpush1.msra.mxu0 %v601
  %916 = vmatprep.subr.mxu0 0.0
  %917 = vmatpush1.msra.mxu0 %v602
  %918 = vmatprep.subr.mxu0 0.0
  %919 = vmatpush1.msra.mxu0 0.0
  %920 = vmatprep.subr.mxu0 0.0
  %921 = vmatpush1.msra.mxu0 0.0
  %922 = vmatprep.subr.mxu0 0.0
  %923 = vmatpush1.msra.mxu0 0.0
  %924 = vmatprep.subr.mxu0 0.0
  %925 = vmatpush1.msra.mxu0 0.0
  %926 = vmatprep.subr.mxu0 0.0
  %927 = vmatpush1.msra.mxu0 0.0
  %928 = vmatprep.subr.mxu0 0.0
  %929 = vmatpush1.msra.mxu0 0.0
  %930 = vmatprep.subr.mxu0 0.0
  %931 = vmatpush1.msra.mxu0 0.0
  %932 = vmatprep.subr.mxu0 0.0
  %933 = vmatpush1.msra.mxu0 0.0
  %934 = vmatprep.subr.mxu0 0.0
  %935 = vmatpush1.msra.mxu0 0.0
  %936 = vmatprep.subr.mxu0 0.0
  %937 = vmatpush1.msra.mxu0 0.0
  %938 = vmatprep.subr.mxu0 0.0
  %939 = vmatpush1.msra.mxu0 0.0
  %940 = vmatprep.subr.mxu0 0.0
  %941 = vmatpush1.msra.mxu0 0.0
  %942 = vmatprep.subr.mxu0 0.0
  %943 = vmatpush1.msra.mxu0 0.0
  %944 = vmatprep.subr.mxu0 0.0
  %945 = vmatpush1.msra.mxu0 0.0
  %946 = vmatprep.subr.mxu0 0.0
  %947 = vmatpush1.msra.mxu0 0.0
  %948 = vmatprep.subr.mxu0 0.0
  %949 = vmatpush1.msra.mxu0 0.0
  %950 = vmatprep.mubr.f32.mxu0 0.0
  %951 = vmatmul.mubr.f32.gmra.mrb[0].mxu0 %v885
  %v952 = vpop.f32.mrb[0].mxu0
  %v953 = vadd.f32 0.0, %v952
  %v954 = vpop.f32.mrb[0].mxu0
  %955 = vdwg.mxu0
  %v956 = vlaneseq
  %v957 = vshrl.u32 %v956, 7
  %v958 = vsub.s32 0, %v957
  %v959 = vrot.slane %v953, %v958
  %v960 = vmul.f32 %v411, %v959
  %v961 = vmul.f32 %v416, %v959
  %v962 = vmul.f32 %v421, %v959
  %v963 = vmul.f32 %v426, %v959
  %v964 = vmul.f32 %v431, %v959
  %v965 = vmul.f32 %v436, %v959
  %v966 = vmul.f32 %v441, %v959
  %v967 = vmul.f32 %v446, %v959
  %v968 = vmul.f32 %v451, %v959
  %v969 = vmul.f32 %v456, %v959
  %v970 = vmul.f32 %v461, %v959
  %v971 = vmul.f32 %v466, %v959
  %v972 = vmul.f32 %v471, %v959
  %v973 = vmul.f32 %v476, %v959
  %v974 = vmul.f32 %v481, %v959
  %v975 = vmul.f32 %v486, %v959
  %v976 = vmul.f32 %v491, %v959
  %v977 = vmul.f32 %v496, %v959
  %v978 = vmul.f32 %v501, %v959
  %v979 = vmul.f32 %v506, %v959
  %v980 = vmul.f32 %v511, %v959
  %v981 = vmul.f32 %v516, %v959
  %v982 = vmul.f32 %v521, %v959
  %v983 = vmul.f32 %v526, %v959
  %v984 = vmul.f32 %v531, %v959
  %v985 = vmul.f32 %v536, %v959
  %v986 = vmul.f32 %v541, %v959
  %v987 = vmul.f32 %v546, %v959
  %v988 = vmul.f32 %v551, %v959
  %v989 = vmul.f32 %v556, %v959
  %v990 = vmul.f32 %v561, %v959
  %v991 = vmul.f32 %v566, %v959
  %v992 = vlaneseq
  %v993 = vshrl.u32 %v992, 7
  %v994 = vsub.s32 1, %v993
  %v995 = vrot.slane %v953, %v994
  %v996 = vadd.f32 %v960, %v995
  %v997 = vadd.f32 %v961, %v995
  %v998 = vadd.f32 %v962, %v995
  %v999 = vadd.f32 %v963, %v995
  %v1000 = vadd.f32 %v964, %v995
  %v1001 = vadd.f32 %v965, %v995
  %v1002 = vadd.f32 %v966, %v995
  %v1003 = vadd.f32 %v967, %v995
  %v1004 = vadd.f32 %v968, %v995
  %v1005 = vadd.f32 %v969, %v995
  %v1006 = vadd.f32 %v970, %v995
  %v1007 = vadd.f32 %v971, %v995
  %v1008 = vadd.f32 %v972, %v995
  %v1009 = vadd.f32 %v973, %v995
  %v1010 = vadd.f32 %v974, %v995
  %v1011 = vadd.f32 %v975, %v995
  %v1012 = vadd.f32 %v976, %v995
  %v1013 = vadd.f32 %v977, %v995
  %v1014 = vadd.f32 %v978, %v995
  %v1015 = vadd.f32 %v979, %v995
  %v1016 = vadd.f32 %v980, %v995
  %v1017 = vadd.f32 %v981, %v995
  %v1018 = vadd.f32 %v982, %v995
  %v1019 = vadd.f32 %v983, %v995
  %v1020 = vadd.f32 %v984, %v995
  %v1021 = vadd.f32 %v985, %v995
  %v1022 = vadd.f32 %v986, %v995
  %v1023 = vadd.f32 %v987, %v995
  %v1024 = vadd.f32 %v988, %v995
  %v1025 = vadd.f32 %v989, %v995
  %v1026 = vadd.f32 %v990, %v995
  %v1027 = vadd.f32 %v991, %v995
  %vm1028 = vcmp.gt.f32.partialorder %v996, 0.0
  %vm1029 = vcmp.gt.f32.partialorder %v997, 0.0
  %vm1030 = vcmp.gt.f32.partialorder %v998, 0.0
  %vm1031 = vcmp.gt.f32.partialorder %v999, 0.0
  %vm1032 = vcmp.gt.f32.partialorder %v1000, 0.0
  %vm1033 = vcmp.gt.f32.partialorder %v1001, 0.0
  %vm1034 = vcmp.gt.f32.partialorder %v1002, 0.0
  %vm1035 = vcmp.gt.f32.partialorder %v1003, 0.0
  %vm1036 = vcmp.gt.f32.partialorder %v1004, 0.0
  %vm1037 = vcmp.gt.f32.partialorder %v1005, 0.0
  %vm1038 = vcmp.gt.f32.partialorder %v1006, 0.0
  %vm1039 = vcmp.gt.f32.partialorder %v1007, 0.0
  %vm1040 = vcmp.gt.f32.partialorder %v1008, 0.0
  %vm1041 = vcmp.gt.f32.partialorder %v1009, 0.0
  %vm1042 = vcmp.gt.f32.partialorder %v1010, 0.0
  %vm1043 = vcmp.gt.f32.partialorder %v1011, 0.0
  %vm1044 = vcmp.gt.f32.partialorder %v1012, 0.0
  %vm1045 = vcmp.gt.f32.partialorder %v1013, 0.0
  %vm1046 = vcmp.gt.f32.partialorder %v1014, 0.0
  %vm1047 = vcmp.gt.f32.partialorder %v1015, 0.0
  %vm1048 = vcmp.gt.f32.partialorder %v1016, 0.0
  %vm1049 = vcmp.gt.f32.partialorder %v1017, 0.0
  %vm1050 = vcmp.gt.f32.partialorder %v1018, 0.0
  %vm1051 = vcmp.gt.f32.partialorder %v1019, 0.0
  %vm1052 = vcmp.gt.f32.partialorder %v1020, 0.0
  %vm1053 = vcmp.gt.f32.partialorder %v1021, 0.0
  %vm1054 = vcmp.gt.f32.partialorder %v1022, 0.0
  %vm1055 = vcmp.gt.f32.partialorder %v1023, 0.0
  %vm1056 = vcmp.gt.f32.partialorder %v1024, 0.0
  %vm1057 = vcmp.gt.f32.partialorder %v1025, 0.0
  %vm1058 = vcmp.gt.f32.partialorder %v1026, 0.0
  %vm1059 = vcmp.gt.f32.partialorder %v1027, 0.0
  %v1060 = vmin.f32 %v996, 0.0
  %v1061 = vmin.f32 %v997, 0.0
  %v1062 = vmin.f32 %v998, 0.0
  %v1063 = vmin.f32 %v999, 0.0
  %v1064 = vmin.f32 %v1000, 0.0
  %v1065 = vmin.f32 %v1001, 0.0
  %v1066 = vmin.f32 %v1002, 0.0
  %v1067 = vmin.f32 %v1003, 0.0
  %v1068 = vmin.f32 %v1004, 0.0
  %v1069 = vmin.f32 %v1005, 0.0
  %v1070 = vmin.f32 %v1006, 0.0
  %v1071 = vmin.f32 %v1007, 0.0
  %v1072 = vmin.f32 %v1008, 0.0
  %v1073 = vmin.f32 %v1009, 0.0
  %v1074 = vmin.f32 %v1010, 0.0
  %v1075 = vmin.f32 %v1011, 0.0
  %v1076 = vmin.f32 %v1012, 0.0
  %v1077 = vmin.f32 %v1013, 0.0
  %v1078 = vmin.f32 %v1014, 0.0
  %v1079 = vmin.f32 %v1015, 0.0
  %v1080 = vmin.f32 %v1016, 0.0
  %v1081 = vmin.f32 %v1017, 0.0
  %v1082 = vmin.f32 %v1018, 0.0
  %v1083 = vmin.f32 %v1019, 0.0
  %v1084 = vmin.f32 %v1020, 0.0
  %v1085 = vmin.f32 %v1021, 0.0
  %v1086 = vmin.f32 %v1022, 0.0
  %v1087 = vmin.f32 %v1023, 0.0
  %v1088 = vmin.f32 %v1024, 0.0
  %v1089 = vmin.f32 %v1025, 0.0
  %v1090 = vmin.f32 %v1026, 0.0
  %v1091 = vmin.f32 %v1027, 0.0
  %v1092 = vmul.f32 %v1060, 1.442695
  %v1093 = vpow.pop %v1092
  %v1094 = vmul.f32 %v1061, 1.442695
  %v1095 = vpow.pop %v1094
  %v1096 = vmul.f32 %v1062, 1.442695
  %v1097 = vpow.pop %v1096
  %v1098 = vmul.f32 %v1063, 1.442695
  %v1099 = vpow.pop %v1098
  %v1100 = vmul.f32 %v1064, 1.442695
  %v1101 = vpow.pop %v1100
  %v1102 = vmul.f32 %v1065, 1.442695
  %v1103 = vpow.pop %v1102
  %v1104 = vmul.f32 %v1066, 1.442695
  %v1105 = vpow.pop %v1104
  %v1106 = vmul.f32 %v1067, 1.442695
  %v1107 = vpow.pop %v1106
  %v1108 = vmul.f32 %v1068, 1.442695
  %v1109 = vpow.pop %v1108
  %v1110 = vmul.f32 %v1069, 1.442695
  %v1111 = vpow.pop %v1110
  %v1112 = vmul.f32 %v1070, 1.442695
  %v1113 = vpow.pop %v1112
  %v1114 = vmul.f32 %v1071, 1.442695
  %v1115 = vpow.pop %v1114
  %v1116 = vmul.f32 %v1072, 1.442695
  %v1117 = vpow.pop %v1116
  %v1118 = vmul.f32 %v1073, 1.442695
  %v1119 = vpow.pop %v1118
  %v1120 = vmul.f32 %v1074, 1.442695
  %v1121 = vpow.pop %v1120
  %v1122 = vmul.f32 %v1075, 1.442695
  %v1123 = vpow.pop %v1122
  %v1124 = vmul.f32 %v1076, 1.442695
  %v1125 = vpow.pop %v1124
  %v1126 = vmul.f32 %v1077, 1.442695
  %v1127 = vpow.pop %v1126
  %v1128 = vmul.f32 %v1078, 1.442695
  %v1129 = vpow.pop %v1128
  %v1130 = vmul.f32 %v1079, 1.442695
  %v1131 = vpow.pop %v1130
  %v1132 = vmul.f32 %v1080, 1.442695
  %v1133 = vpow.pop %v1132
  %v1134 = vmul.f32 %v1081, 1.442695
  %v1135 = vpow.pop %v1134
  %v1136 = vmul.f32 %v1082, 1.442695
  %v1137 = vpow.pop %v1136
  %v1138 = vmul.f32 %v1083, 1.442695
  %v1139 = vpow.pop %v1138
  %v1140 = vmul.f32 %v1084, 1.442695
  %v1141 = vpow.pop %v1140
  %v1142 = vmul.f32 %v1085, 1.442695
  %v1143 = vpow.pop %v1142
  %v1144 = vmul.f32 %v1086, 1.442695
  %v1145 = vpow.pop %v1144
  %v1146 = vmul.f32 %v1087, 1.442695
  %v1147 = vpow.pop %v1146
  %v1148 = vmul.f32 %v1088, 1.442695
  %v1149 = vpow.pop %v1148
  %v1150 = vmul.f32 %v1089, 1.442695
  %v1151 = vpow.pop %v1150
  %v1152 = vmul.f32 %v1090, 1.442695
  %v1153 = vpow.pop %v1152
  %v1154 = vmul.f32 %v1091, 1.442695
  %v1155 = vpow.pop %v1154
  %v1156 = vsub.f32 %v1093, 1.0
  %v1157 = vsub.f32 %v1095, 1.0
  %v1158 = vsub.f32 %v1097, 1.0
  %v1159 = vsub.f32 %v1099, 1.0
  %v1160 = vsub.f32 %v1101, 1.0
  %v1161 = vsub.f32 %v1103, 1.0
  %v1162 = vsub.f32 %v1105, 1.0
  %v1163 = vsub.f32 %v1107, 1.0
  %v1164 = vsub.f32 %v1109, 1.0
  %v1165 = vsub.f32 %v1111, 1.0
  %v1166 = vsub.f32 %v1113, 1.0
  %v1167 = vsub.f32 %v1115, 1.0
  %v1168 = vsub.f32 %v1117, 1.0
  %v1169 = vsub.f32 %v1119, 1.0
  %v1170 = vsub.f32 %v1121, 1.0
  %v1171 = vsub.f32 %v1123, 1.0
  %v1172 = vsub.f32 %v1125, 1.0
  %v1173 = vsub.f32 %v1127, 1.0
  %v1174 = vsub.f32 %v1129, 1.0
  %v1175 = vsub.f32 %v1131, 1.0
  %v1176 = vsub.f32 %v1133, 1.0
  %v1177 = vsub.f32 %v1135, 1.0
  %v1178 = vsub.f32 %v1137, 1.0
  %v1179 = vsub.f32 %v1139, 1.0
  %v1180 = vsub.f32 %v1141, 1.0
  %v1181 = vsub.f32 %v1143, 1.0
  %v1182 = vsub.f32 %v1145, 1.0
  %v1183 = vsub.f32 %v1147, 1.0
  %v1184 = vsub.f32 %v1149, 1.0
  %v1185 = vsub.f32 %v1151, 1.0
  %v1186 = vsub.f32 %v1153, 1.0
  %v1187 = vsub.f32 %v1155, 1.0
  %v1188 = vsel %vm1028, %v996, %v1156
  %v1189 = vsel %vm1029, %v997, %v1157
  %v1190 = vsel %vm1030, %v998, %v1158
  %v1191 = vsel %vm1031, %v999, %v1159
  %v1192 = vsel %vm1032, %v1000, %v1160
  %v1193 = vsel %vm1033, %v1001, %v1161
  %v1194 = vsel %vm1034, %v1002, %v1162
  %v1195 = vsel %vm1035, %v1003, %v1163
  %v1196 = vsel %vm1036, %v1004, %v1164
  %v1197 = vsel %vm1037, %v1005, %v1165
  %v1198 = vsel %vm1038, %v1006, %v1166
  %v1199 = vsel %vm1039, %v1007, %v1167
  %v1200 = vsel %vm1040, %v1008, %v1168
  %v1201 = vsel %vm1041, %v1009, %v1169
  %v1202 = vsel %vm1042, %v1010, %v1170
  %v1203 = vsel %vm1043, %v1011, %v1171
  %v1204 = vsel %vm1044, %v1012, %v1172
  %v1205 = vsel %vm1045, %v1013, %v1173
  %v1206 = vsel %vm1046, %v1014, %v1174
  %v1207 = vsel %vm1047, %v1015, %v1175
  %v1208 = vsel %vm1048, %v1016, %v1176
  %v1209 = vsel %vm1049, %v1017, %v1177
  %v1210 = vsel %vm1050, %v1018, %v1178
  %v1211 = vsel %vm1051, %v1019, %v1179
  %v1212 = vsel %vm1052, %v1020, %v1180
  %v1213 = vsel %vm1053, %v1021, %v1181
  %v1214 = vsel %vm1054, %v1022, %v1182
  %v1215 = vsel %vm1055, %v1023, %v1183
  %v1216 = vsel %vm1056, %v1024, %v1184
  %v1217 = vsel %vm1057, %v1025, %v1185
  %v1218 = vsel %vm1058, %v1026, %v1186
  %v1219 = vsel %vm1059, %v1027, %v1187
  %v1220 = vld [vmem:[%s9] sm:$0xff]
  %v1221 = vld [vmem:[%s9 + $0x8] sm:$0xff]
  %v1222 = vld [vmem:[%s9 + $0x10] sm:$0xff]
  %v1223 = vld [vmem:[%s9 + $0x18] sm:$0xff]
  %v1224 = vld [vmem:[%s9 + $0x20] sm:$0xff]
  %v1225 = vld [vmem:[%s9 + $0x28] sm:$0xff]
  %v1226 = vld [vmem:[%s9 + $0x30] sm:$0xff]
  %v1227 = vld [vmem:[%s9 + $0x38] sm:$0xff]
  %v1228 = vld [vmem:[%s9 + $0x40] sm:$0xff]
  %v1229 = vld [vmem:[%s9 + $0x48] sm:$0xff]
  %v1230 = vld [vmem:[%s9 + $0x50] sm:$0xff]
  %v1231 = vld [vmem:[%s9 + $0x58] sm:$0xff]
  %v1232 = vld [vmem:[%s9 + $0x60] sm:$0xff]
  %v1233 = vld [vmem:[%s9 + $0x68] sm:$0xff]
  %v1234 = vld [vmem:[%s9 + $0x70] sm:$0xff]
  %v1235 = vld [vmem:[%s9 + $0x78] sm:$0xff]
  %v1236 = vld [vmem:[%s10] sm:$0x1]
  %v1238 = vlaneseq
  %v1239 = vshrl.u32 %v1238, 7
  %v1240 = vsub.s32 0, %v1239
  %v1241 = vrot.slane %v1236, %v1240
  %1243 = vmatprep.subr.mxu0 0.0
  %1244 = vmatpush1.msra.mxu0 %v1220
  %1245 = vmatprep.subr.mxu0 0.0
  %1246 = vmatpush1.msra.mxu0 %v1221
  %1247 = vmatprep.subr.mxu0 0.0
  %1248 = vmatpush1.msra.mxu0 %v1222
  %1249 = vmatprep.subr.mxu0 0.0
  %1250 = vmatpush1.msra.mxu0 %v1223
  %1251 = vmatprep.subr.mxu0 0.0
  %1252 = vmatpush1.msra.mxu0 %v1224
  %1253 = vmatprep.subr.mxu0 0.0
  %1254 = vmatpush1.msra.mxu0 %v1225
  %1255 = vmatprep.subr.mxu0 0.0
  %1256 = vmatpush1.msra.mxu0 %v1226
  %1257 = vmatprep.subr.mxu0 0.0
  %1258 = vmatpush1.msra.mxu0 %v1227
  %1259 = vmatprep.subr.mxu0 0.0
  %1260 = vmatpush1.msra.mxu0 %v1228
  %1261 = vmatprep.subr.mxu0 0.0
  %1262 = vmatpush1.msra.mxu0 %v1229
  %1263 = vmatprep.subr.mxu0 0.0
  %1264 = vmatpush1.msra.mxu0 %v1230
  %1265 = vmatprep.subr.mxu0 0.0
  %1266 = vmatpush1.msra.mxu0 %v1231
  %1267 = vmatprep.subr.mxu0 0.0
  %1268 = vmatpush1.msra.mxu0 %v1232
  %1269 = vmatprep.subr.mxu0 0.0
  %1270 = vmatpush1.msra.mxu0 %v1233
  %1271 = vmatprep.subr.mxu0 0.0
  %1272 = vmatpush1.msra.mxu0 %v1234
  %1273 = vmatprep.subr.mxu0 0.0
  %1274 = vmatpush1.msra.mxu0 %v1235
  %1275 = vmatprep.subr.mxu0 0.0
  %1276 = vmatpush1.msra.mxu0 0.0
  %1277 = vmatprep.subr.mxu0 0.0
  %1278 = vmatpush1.msra.mxu0 0.0
  %1279 = vmatprep.subr.mxu0 0.0
  %1280 = vmatpush1.msra.mxu0 0.0
  %1281 = vmatprep.subr.mxu0 0.0
  %1282 = vmatpush1.msra.mxu0 0.0
  %1283 = vmatprep.subr.mxu0 0.0
  %1284 = vmatpush1.msra.mxu0 0.0
  %1285 = vmatprep.subr.mxu0 0.0
  %1286 = vmatpush1.msra.mxu0 0.0
  %1287 = vmatprep.subr.mxu0 0.0
  %1288 = vmatpush1.msra.mxu0 0.0
  %1289 = vmatprep.subr.mxu0 0.0
  %1290 = vmatpush1.msra.mxu0 0.0
  %1291 = vmatprep.subr.mxu0 0.0
  %1292 = vmatpush1.msra.mxu0 0.0
  %1293 = vmatprep.subr.mxu0 0.0
  %1294 = vmatpush1.msra.mxu0 0.0
  %1295 = vmatprep.subr.mxu0 0.0
  %1296 = vmatpush1.msra.mxu0 0.0
  %1297 = vmatprep.subr.mxu0 0.0
  %1298 = vmatpush1.msra.mxu0 0.0
  %1299 = vmatprep.subr.mxu0 0.0
  %1300 = vmatpush1.msra.mxu0 0.0
  %1301 = vmatprep.subr.mxu0 0.0
  %1302 = vmatpush1.msra.mxu0 0.0
  %1303 = vmatprep.subr.mxu0 0.0
  %1304 = vmatpush1.msra.mxu0 0.0
  %1305 = vmatprep.subr.mxu0 0.0
  %1306 = vmatpush1.msra.mxu0 0.0
  %1307 = vmatprep.mubr.f32.mxu0 0.0
  %1308 = vmatmul.mubr.f32.gmra.mrb[0].mxu0 %v1188
  %v1309 = vpop.f32.mrb[0].mxu0
  %v1310 = vadd.f32 %v1241, %v1309
  %v1311 = vpop.f32.mrb[0].mxu0
  %1312 = vmatprep.mubr.f32.mxu0 0.0
  %1313 = vmatmul.mubr.f32.gmra.mrb[0].mxu0 %v1189
  %v1314 = vpop.f32.mrb[0].mxu0
  %v1315 = vadd.f32 %v1241, %v1314
  %v1316 = vpop.f32.mrb[0].mxu0
  %1317 = vmatprep.mubr.f32.mxu0 0.0
  %1318 = vmatmul.mubr.f32.gmra.mrb[0].mxu0 %v1190
  %v1319 = vpop.f32.mrb[0].mxu0
  %v1320 = vadd.f32 %v1241, %v1319
  %v1321 = vpop.f32.mrb[0].mxu0
  %1322 = vmatprep.mubr.f32.mxu0 0.0
  %1323 = vmatmul.mubr.f32.gmra.mrb[0].mxu0 %v1191
  %v1324 = vpop.f32.mrb[0].mxu0
  %v1325 = vadd.f32 %v1241, %v1324
  %v1326 = vpop.f32.mrb[0].mxu0
  %1327 = vmatprep.mubr.f32.mxu0 0.0
  %1328 = vmatmul.mubr.f32.gmra.mrb[0].mxu0 %v1192
  %v1329 = vpop.f32.mrb[0].mxu0
  %v1330 = vadd.f32 %v1241, %v1329
  %v1331 = vpop.f32.mrb[0].mxu0
  %1332 = vmatprep.mubr.f32.mxu0 0.0
  %1333 = vmatmul.mubr.f32.gmra.mrb[0].mxu0 %v1193
  %v1334 = vpop.f32.mrb[0].mxu0
  %v1335 = vadd.f32 %v1241, %v1334
  %v1336 = vpop.f32.mrb[0].mxu0
  %1337 = vmatprep.mubr.f32.mxu0 0.0
  %1338 = vmatmul.mubr.f32.gmra.mrb[0].mxu0 %v1194
  %v1339 = vpop.f32.mrb[0].mxu0
  %v1340 = vadd.f32 %v1241, %v1339
  %v1341 = vpop.f32.mrb[0].mxu0
  %1342 = vmatprep.mubr.f32.mxu0 0.0
  %1343 = vmatmul.mubr.f32.gmra.mrb[0].mxu0 %v1195
  %v1344 = vpop.f32.mrb[0].mxu0
  %v1345 = vadd.f32 %v1241, %v1344
  %v1346 = vpop.f32.mrb[0].mxu0
  %1347 = vmatprep.mubr.f32.mxu0 0.0
  %1348 = vmatmul.mubr.f32.gmra.mrb[0].mxu0 %v1196
  %v1349 = vpop.f32.mrb[0].mxu0
  %v1350 = vadd.f32 %v1241, %v1349
  %v1351 = vpop.f32.mrb[0].mxu0
  %1352 = vmatprep.mubr.f32.mxu0 0.0
  %1353 = vmatmul.mubr.f32.gmra.mrb[0].mxu0 %v1197
  %v1354 = vpop.f32.mrb[0].mxu0
  %v1355 = vadd.f32 %v1241, %v1354
  %v1356 = vpop.f32.mrb[0].mxu0
  %1357 = vmatprep.mubr.f32.mxu0 0.0
  %1358 = vmatmul.mubr.f32.gmra.mrb[0].mxu0 %v1198
  %v1359 = vpop.f32.mrb[0].mxu0
  %v1360 = vadd.f32 %v1241, %v1359
  %v1361 = vpop.f32.mrb[0].mxu0
  %1362 = vmatprep.mubr.f32.mxu0 0.0
  %1363 = vmatmul.mubr.f32.gmra.mrb[0].mxu0 %v1199
  %v1364 = vpop.f32.mrb[0].mxu0
  %v1365 = vadd.f32 %v1241, %v1364
  %v1366 = vpop.f32.mrb[0].mxu0
  %1367 = vmatprep.mubr.f32.mxu0 0.0
  %1368 = vmatmul.mubr.f32.gmra.mrb[0].mxu0 %v1200
  %v1369 = vpop.f32.mrb[0].mxu0
  %v1370 = vadd.f32 %v1241, %v1369
  %v1371 = vpop.f32.mrb[0].mxu0
  %1372 = vmatprep.mubr.f32.mxu0 0.0
  %1373 = vmatmul.mubr.f32.gmra.mrb[0].mxu0 %v1201
  %v1374 = vpop.f32.mrb[0].mxu0
  %v1375 = vadd.f32 %v1241, %v1374
  %v1376 = vpop.f32.mrb[0].mxu0
  %1377 = vmatprep.mubr.f32.mxu0 0.0
  %1378 = vmatmul.mubr.f32.gmra.mrb[0].mxu0 %v1202
  %v1379 = vpop.f32.mrb[0].mxu0
  %v1380 = vadd.f32 %v1241, %v1379
  %v1381 = vpop.f32.mrb[0].mxu0
  %1382 = vmatprep.mubr.f32.mxu0 0.0
  %1383 = vmatmul.mubr.f32.gmra.mrb[0].mxu0 %v1203
  %v1384 = vpop.f32.mrb[0].mxu0
  %v1385 = vadd.f32 %v1241, %v1384
  %v1386 = vpop.f32.mrb[0].mxu0
  %1387 = vmatprep.mubr.f32.mxu0 0.0
  %1388 = vmatmul.mubr.f32.gmra.mrb[0].mxu0 %v1204
  %v1389 = vpop.f32.mrb[0].mxu0
  %v1390 = vadd.f32 %v1241, %v1389
  %v1391 = vpop.f32.mrb[0].mxu0
  %1392 = vmatprep.mubr.f32.mxu0 0.0
  %1393 = vmatmul.mubr.f32.gmra.mrb[0].mxu0 %v1205
  %v1394 = vpop.f32.mrb[0].mxu0
  %v1395 = vadd.f32 %v1241, %v1394
  %v1396 = vpop.f32.mrb[0].mxu0
  %1397 = vmatprep.mubr.f32.mxu0 0.0
  %1398 = vmatmul.mubr.f32.gmra.mrb[0].mxu0 %v1206
  %v1399 = vpop.f32.mrb[0].mxu0
  %v1400 = vadd.f32 %v1241, %v1399
  %v1401 = vpop.f32.mrb[0].mxu0
  %1402 = vmatprep.mubr.f32.mxu0 0.0
  %1403 = vmatmul.mubr.f32.gmra.mrb[0].mxu0 %v1207
  %v1404 = vpop.f32.mrb[0].mxu0
  %v1405 = vadd.f32 %v1241, %v1404
  %v1406 = vpop.f32.mrb[0].mxu0
  %1407 = vmatprep.mubr.f32.mxu0 0.0
  %1408 = vmatmul.mubr.f32.gmra.mrb[0].mxu0 %v1208
  %v1409 = vpop.f32.mrb[0].mxu0
  %v1410 = vadd.f32 %v1241, %v1409
  %v1411 = vpop.f32.mrb[0].mxu0
  %1412 = vmatprep.mubr.f32.mxu0 0.0
  %1413 = vmatmul.mubr.f32.gmra.mrb[0].mxu0 %v1209
  %v1414 = vpop.f32.mrb[0].mxu0
  %v1415 = vadd.f32 %v1241, %v1414
  %v1416 = vpop.f32.mrb[0].mxu0
  %1417 = vmatprep.mubr.f32.mxu0 0.0
  %1418 = vmatmul.mubr.f32.gmra.mrb[0].mxu0 %v1210
  %v1419 = vpop.f32.mrb[0].mxu0
  %v1420 = vadd.f32 %v1241, %v1419
  %v1421 = vpop.f32.mrb[0].mxu0
  %1422 = vmatprep.mubr.f32.mxu0 0.0
  %1423 = vmatmul.mubr.f32.gmra.mrb[0].mxu0 %v1211
  %v1424 = vpop.f32.mrb[0].mxu0
  %v1425 = vadd.f32 %v1241, %v1424
  %v1426 = vpop.f32.mrb[0].mxu0
  %1427 = vmatprep.mubr.f32.mxu0 0.0
  %1428 = vmatmul.mubr.f32.gmra.mrb[0].mxu0 %v1212
  %v1429 = vpop.f32.mrb[0].mxu0
  %v1430 = vadd.f32 %v1241, %v1429
  %v1431 = vpop.f32.mrb[0].mxu0
  %1432 = vmatprep.mubr.f32.mxu0 0.0
  %1433 = vmatmul.mubr.f32.gmra.mrb[0].mxu0 %v1213
  %v1434 = vpop.f32.mrb[0].mxu0
  %v1435 = vadd.f32 %v1241, %v1434
  %v1436 = vpop.f32.mrb[0].mxu0
  %1437 = vmatprep.mubr.f32.mxu0 0.0
  %1438 = vmatmul.mubr.f32.gmra.mrb[0].mxu0 %v1214
  %v1439 = vpop.f32.mrb[0].mxu0
  %v1440 = vadd.f32 %v1241, %v1439
  %v1441 = vpop.f32.mrb[0].mxu0
  %1442 = vmatprep.mubr.f32.mxu0 0.0
  %1443 = vmatmul.mubr.f32.gmra.mrb[0].mxu0 %v1215
  %v1444 = vpop.f32.mrb[0].mxu0
  %v1445 = vadd.f32 %v1241, %v1444
  %v1446 = vpop.f32.mrb[0].mxu0
  %1447 = vmatprep.mubr.f32.mxu0 0.0
  %1448 = vmatmul.mubr.f32.gmra.mrb[0].mxu0 %v1216
  %v1449 = vpop.f32.mrb[0].mxu0
  %v1450 = vadd.f32 %v1241, %v1449
  %v1451 = vpop.f32.mrb[0].mxu0
  %1452 = vmatprep.mubr.f32.mxu0 0.0
  %1453 = vmatmul.mubr.f32.gmra.mrb[0].mxu0 %v1217
  %v1454 = vpop.f32.mrb[0].mxu0
  %v1455 = vadd.f32 %v1241, %v1454
  %v1456 = vpop.f32.mrb[0].mxu0
  %1457 = vmatprep.mubr.f32.mxu0 0.0
  %1458 = vmatmul.mubr.f32.gmra.mrb[0].mxu0 %v1218
  %v1459 = vpop.f32.mrb[0].mxu0
  %v1460 = vadd.f32 %v1241, %v1459
  %v1461 = vpop.f32.mrb[0].mxu0
  %1462 = vmatprep.mubr.f32.mxu0 0.0
  %1463 = vmatmul.mubr.f32.gmra.mrb[0].mxu0 %v1219
  %v1464 = vpop.f32.mrb[0].mxu0
  %v1465 = vadd.f32 %v1241, %v1464
  %v1466 = vpop.f32.mrb[0].mxu0
  %1467 = vdwg.mxu0
  %v1468 = vld [vmem:[%s11] sm:$0xff]
  %v1469 = vld [vmem:[%s11 + $0x8] sm:$0xff]
  %v1470 = vld [vmem:[%s11 + $0x10] sm:$0xff]
  %v1471 = vld [vmem:[%s11 + $0x18] sm:$0xff]
  %v1472 = vld [vmem:[%s11 + $0x20] sm:$0xff]
  %v1473 = vld [vmem:[%s11 + $0x28] sm:$0xff]
  %v1474 = vld [vmem:[%s11 + $0x30] sm:$0xff]
  %v1475 = vld [vmem:[%s11 + $0x38] sm:$0xff]
  %v1476 = vld [vmem:[%s11 + $0x40] sm:$0xff]
  %v1477 = vld [vmem:[%s11 + $0x48] sm:$0xff]
  %v1478 = vld [vmem:[%s11 + $0x50] sm:$0xff]
  %v1479 = vld [vmem:[%s11 + $0x58] sm:$0xff]
  %v1480 = vld [vmem:[%s11 + $0x60] sm:$0xff]
  %v1481 = vld [vmem:[%s11 + $0x68] sm:$0xff]
  %v1482 = vld [vmem:[%s11 + $0x70] sm:$0xff]
  %v1483 = vld [vmem:[%s11 + $0x78] sm:$0xff]
  %1484 = vmatprep.subr.mxu0 0.0
  %1485 = vmatpush1.msra.mxu0 %v1468
  %1486 = vmatprep.subr.mxu0 0.0
  %1487 = vmatpush1.msra.mxu0 %v1469
  %1488 = vmatprep.subr.mxu0 0.0
  %1489 = vmatpush1.msra.mxu0 %v1470
  %1490 = vmatprep.subr.mxu0 0.0
  %1491 = vmatpush1.msra.mxu0 %v1471
  %1492 = vmatprep.subr.mxu0 0.0
  %1493 = vmatpush1.msra.mxu0 %v1472
  %1494 = vmatprep.subr.mxu0 0.0
  %1495 = vmatpush1.msra.mxu0 %v1473
  %1496 = vmatprep.subr.mxu0 0.0
  %1497 = vmatpush1.msra.mxu0 %v1474
  %1498 = vmatprep.subr.mxu0 0.0
  %1499 = vmatpush1.msra.mxu0 %v1475
  %1500 = vmatprep.subr.mxu0 0.0
  %1501 = vmatpush1.msra.mxu0 %v1476
  %1502 = vmatprep.subr.mxu0 0.0
  %1503 = vmatpush1.msra.mxu0 %v1477
  %1504 = vmatprep.subr.mxu0 0.0
  %1505 = vmatpush1.msra.mxu0 %v1478
  %1506 = vmatprep.subr.mxu0 0.0
  %1507 = vmatpush1.msra.mxu0 %v1479
  %1508 = vmatprep.subr.mxu0 0.0
  %1509 = vmatpush1.msra.mxu0 %v1480
  %1510 = vmatprep.subr.mxu0 0.0
  %1511 = vmatpush1.msra.mxu0 %v1481
  %1512 = vmatprep.subr.mxu0 0.0
  %1513 = vmatpush1.msra.mxu0 %v1482
  %1514 = vmatprep.subr.mxu0 0.0
  %1515 = vmatpush1.msra.mxu0 %v1483
  %1516 = vmatprep.subr.mxu0 0.0
  %1517 = vmatpush1.msra.mxu0 0.0
  %1518 = vmatprep.subr.mxu0 0.0
  %1519 = vmatpush1.msra.mxu0 0.0
  %1520 = vmatprep.subr.mxu0 0.0
  %1521 = vmatpush1.msra.mxu0 0.0
  %1522 = vmatprep.subr.mxu0 0.0
  %1523 = vmatpush1.msra.mxu0 0.0
  %1524 = vmatprep.subr.mxu0 0.0
  %1525 = vmatpush1.msra.mxu0 0.0
  %1526 = vmatprep.subr.mxu0 0.0
  %1527 = vmatpush1.msra.mxu0 0.0
  %1528 = vmatprep.subr.mxu0 0.0
  %1529 = vmatpush1.msra.mxu0 0.0
  %1530 = vmatprep.subr.mxu0 0.0
  %1531 = vmatpush1.msra.mxu0 0.0
  %1532 = vmatprep.subr.mxu0 0.0
  %1533 = vmatpush1.msra.mxu0 0.0
  %1534 = vmatprep.subr.mxu0 0.0
  %1535 = vmatpush1.msra.mxu0 0.0
  %1536 = vmatprep.subr.mxu0 0.0
  %1537 = vmatpush1.msra.mxu0 0.0
  %1538 = vmatprep.subr.mxu0 0.0
  %1539 = vmatpush1.msra.mxu0 0.0
  %1540 = vmatprep.subr.mxu0 0.0
  %1541 = vmatpush1.msra.mxu0 0.0
  %1542 = vmatprep.subr.mxu0 0.0
  %1543 = vmatpush1.msra.mxu0 0.0
  %1544 = vmatprep.subr.mxu0 0.0
  %1545 = vmatpush1.msra.mxu0 0.0
  %1546 = vmatprep.subr.mxu0 0.0
  %1547 = vmatpush1.msra.mxu0 0.0
  %1548 = vmatprep.mubr.f32.mxu0 0.0
  %1549 = vmatmul.mubr.f32.gmra.mrb[0].mxu0 %v1310
  %v1550 = vpop.f32.mrb[0].mxu0
  %v1551 = vadd.f32 0.0, %v1550
  %v1552 = vpop.f32.mrb[0].mxu0
  %1553 = vmatprep.mubr.f32.mxu0 0.0
  %1554 = vmatmul.mubr.f32.gmra.mrb[0].mxu0 %v1315
  %v1555 = vpop.f32.mrb[0].mxu0
  %v1556 = vadd.f32 0.0, %v1555
  %v1557 = vpop.f32.mrb[0].mxu0
  %1558 = vmatprep.mubr.f32.mxu0 0.0
  %1559 = vmatmul.mubr.f32.gmra.mrb[0].mxu0 %v1320
  %v1560 = vpop.f32.mrb[0].mxu0
  %v1561 = vadd.f32 0.0, %v1560
  %v1562 = vpop.f32.mrb[0].mxu0
  %1563 = vmatprep.mubr.f32.mxu0 0.0
  %1564 = vmatmul.mubr.f32.gmra.mrb[0].mxu0 %v1325
  %v1565 = vpop.f32.mrb[0].mxu0
  %v1566 = vadd.f32 0.0, %v1565
  %v1567 = vpop.f32.mrb[0].mxu0
  %1568 = vmatprep.mubr.f32.mxu0 0.0
  %1569 = vmatmul.mubr.f32.gmra.mrb[0].mxu0 %v1330
  %v1570 = vpop.f32.mrb[0].mxu0
  %v1571 = vadd.f32 0.0, %v1570
  %v1572 = vpop.f32.mrb[0].mxu0
  %1573 = vmatprep.mubr.f32.mxu0 0.0
  %1574 = vmatmul.mubr.f32.gmra.mrb[0].mxu0 %v1335
  %v1575 = vpop.f32.mrb[0].mxu0
  %v1576 = vadd.f32 0.0, %v1575
  %v1577 = vpop.f32.mrb[0].mxu0
  %1578 = vmatprep.mubr.f32.mxu0 0.0
  %1579 = vmatmul.mubr.f32.gmra.mrb[0].mxu0 %v1340
  %v1580 = vpop.f32.mrb[0].mxu0
  %v1581 = vadd.f32 0.0, %v1580
  %v1582 = vpop.f32.mrb[0].mxu0
  %1583 = vmatprep.mubr.f32.mxu0 0.0
  %1584 = vmatmul.mubr.f32.gmra.mrb[0].mxu0 %v1345
  %v1585 = vpop.f32.mrb[0].mxu0
  %v1586 = vadd.f32 0.0, %v1585
  %v1587 = vpop.f32.mrb[0].mxu0
  %1588 = vmatprep.mubr.f32.mxu0 0.0
  %1589 = vmatmul.mubr.f32.gmra.mrb[0].mxu0 %v1350
  %v1590 = vpop.f32.mrb[0].mxu0
  %v1591 = vadd.f32 0.0, %v1590
  %v1592 = vpop.f32.mrb[0].mxu0
  %1593 = vmatprep.mubr.f32.mxu0 0.0
  %1594 = vmatmul.mubr.f32.gmra.mrb[0].mxu0 %v1355
  %v1595 = vpop.f32.mrb[0].mxu0
  %v1596 = vadd.f32 0.0, %v1595
  %v1597 = vpop.f32.mrb[0].mxu0
  %1598 = vmatprep.mubr.f32.mxu0 0.0
  %1599 = vmatmul.mubr.f32.gmra.mrb[0].mxu0 %v1360
  %v1600 = vpop.f32.mrb[0].mxu0
  %v1601 = vadd.f32 0.0, %v1600
  %v1602 = vpop.f32.mrb[0].mxu0
  %1603 = vmatprep.mubr.f32.mxu0 0.0
  %1604 = vmatmul.mubr.f32.gmra.mrb[0].mxu0 %v1365
  %v1605 = vpop.f32.mrb[0].mxu0
  %v1606 = vadd.f32 0.0, %v1605
  %v1607 = vpop.f32.mrb[0].mxu0
  %1608 = vmatprep.mubr.f32.mxu0 0.0
  %1609 = vmatmul.mubr.f32.gmra.mrb[0].mxu0 %v1370
  %v1610 = vpop.f32.mrb[0].mxu0
  %v1611 = vadd.f32 0.0, %v1610
  %v1612 = vpop.f32.mrb[0].mxu0
  %1613 = vmatprep.mubr.f32.mxu0 0.0
  %1614 = vmatmul.mubr.f32.gmra.mrb[0].mxu0 %v1375
  %v1615 = vpop.f32.mrb[0].mxu0
  %v1616 = vadd.f32 0.0, %v1615
  %v1617 = vpop.f32.mrb[0].mxu0
  %1618 = vmatprep.mubr.f32.mxu0 0.0
  %1619 = vmatmul.mubr.f32.gmra.mrb[0].mxu0 %v1380
  %v1620 = vpop.f32.mrb[0].mxu0
  %v1621 = vadd.f32 0.0, %v1620
  %v1622 = vpop.f32.mrb[0].mxu0
  %1623 = vmatprep.mubr.f32.mxu0 0.0
  %1624 = vmatmul.mubr.f32.gmra.mrb[0].mxu0 %v1385
  %v1625 = vpop.f32.mrb[0].mxu0
  %v1626 = vadd.f32 0.0, %v1625
  %v1627 = vpop.f32.mrb[0].mxu0
  %1628 = vmatprep.mubr.f32.mxu0 0.0
  %1629 = vmatmul.mubr.f32.gmra.mrb[0].mxu0 %v1390
  %v1630 = vpop.f32.mrb[0].mxu0
  %v1631 = vadd.f32 0.0, %v1630
  %v1632 = vpop.f32.mrb[0].mxu0
  %1633 = vmatprep.mubr.f32.mxu0 0.0
  %1634 = vmatmul.mubr.f32.gmra.mrb[0].mxu0 %v1395
  %v1635 = vpop.f32.mrb[0].mxu0
  %v1636 = vadd.f32 0.0, %v1635
  %v1637 = vpop.f32.mrb[0].mxu0
  %1638 = vmatprep.mubr.f32.mxu0 0.0
  %1639 = vmatmul.mubr.f32.gmra.mrb[0].mxu0 %v1400
  %v1640 = vpop.f32.mrb[0].mxu0
  %v1641 = vadd.f32 0.0, %v1640
  %v1642 = vpop.f32.mrb[0].mxu0
  %1643 = vmatprep.mubr.f32.mxu0 0.0
  %1644 = vmatmul.mubr.f32.gmra.mrb[0].mxu0 %v1405
  %v1645 = vpop.f32.mrb[0].mxu0
  %v1646 = vadd.f32 0.0, %v1645
  %v1647 = vpop.f32.mrb[0].mxu0
  %1648 = vmatprep.mubr.f32.mxu0 0.0
  %1649 = vmatmul.mubr.f32.gmra.mrb[0].mxu0 %v1410
  %v1650 = vpop.f32.mrb[0].mxu0
  %v1651 = vadd.f32 0.0, %v1650
  %v1652 = vpop.f32.mrb[0].mxu0
  %1653 = vmatprep.mubr.f32.mxu0 0.0
  %1654 = vmatmul.mubr.f32.gmra.mrb[0].mxu0 %v1415
  %v1655 = vpop.f32.mrb[0].mxu0
  %v1656 = vadd.f32 0.0, %v1655
  %v1657 = vpop.f32.mrb[0].mxu0
  %1658 = vmatprep.mubr.f32.mxu0 0.0
  %1659 = vmatmul.mubr.f32.gmra.mrb[0].mxu0 %v1420
  %v1660 = vpop.f32.mrb[0].mxu0
  %v1661 = vadd.f32 0.0, %v1660
  %v1662 = vpop.f32.mrb[0].mxu0
  %1663 = vmatprep.mubr.f32.mxu0 0.0
  %1664 = vmatmul.mubr.f32.gmra.mrb[0].mxu0 %v1425
  %v1665 = vpop.f32.mrb[0].mxu0
  %v1666 = vadd.f32 0.0, %v1665
  %v1667 = vpop.f32.mrb[0].mxu0
  %1668 = vmatprep.mubr.f32.mxu0 0.0
  %1669 = vmatmul.mubr.f32.gmra.mrb[0].mxu0 %v1430
  %v1670 = vpop.f32.mrb[0].mxu0
  %v1671 = vadd.f32 0.0, %v1670
  %v1672 = vpop.f32.mrb[0].mxu0
  %1673 = vmatprep.mubr.f32.mxu0 0.0
  %1674 = vmatmul.mubr.f32.gmra.mrb[0].mxu0 %v1435
  %v1675 = vpop.f32.mrb[0].mxu0
  %v1676 = vadd.f32 0.0, %v1675
  %v1677 = vpop.f32.mrb[0].mxu0
  %1678 = vmatprep.mubr.f32.mxu0 0.0
  %1679 = vmatmul.mubr.f32.gmra.mrb[0].mxu0 %v1440
  %v1680 = vpop.f32.mrb[0].mxu0
  %v1681 = vadd.f32 0.0, %v1680
  %v1682 = vpop.f32.mrb[0].mxu0
  %1683 = vmatprep.mubr.f32.mxu0 0.0
  %1684 = vmatmul.mubr.f32.gmra.mrb[0].mxu0 %v1445
  %v1685 = vpop.f32.mrb[0].mxu0
  %v1686 = vadd.f32 0.0, %v1685
  %v1687 = vpop.f32.mrb[0].mxu0
  %1688 = vmatprep.mubr.f32.mxu0 0.0
  %1689 = vmatmul.mubr.f32.gmra.mrb[0].mxu0 %v1450
  %v1690 = vpop.f32.mrb[0].mxu0
  %v1691 = vadd.f32 0.0, %v1690
  %v1692 = vpop.f32.mrb[0].mxu0
  %1693 = vmatprep.mubr.f32.mxu0 0.0
  %1694 = vmatmul.mubr.f32.gmra.mrb[0].mxu0 %v1455
  %v1695 = vpop.f32.mrb[0].mxu0
  %v1696 = vadd.f32 0.0, %v1695
  %v1697 = vpop.f32.mrb[0].mxu0
  %1698 = vmatprep.mubr.f32.mxu0 0.0
  %1699 = vmatmul.mubr.f32.gmra.mrb[0].mxu0 %v1460
  %v1700 = vpop.f32.mrb[0].mxu0
  %v1701 = vadd.f32 0.0, %v1700
  %v1702 = vpop.f32.mrb[0].mxu0
  %1703 = vmatprep.mubr.f32.mxu0 0.0
  %1704 = vmatmul.mubr.f32.gmra.mrb[0].mxu0 %v1465
  %v1705 = vpop.f32.mrb[0].mxu0
  %v1706 = vadd.f32 0.0, %v1705
  %v1707 = vpop.f32.mrb[0].mxu0
  %1708 = vdwg.mxu0
  %v1709 = vtanh.pop %v1551
  %v1710 = vtanh.pop %v1556
  %v1711 = vtanh.pop %v1561
  %v1712 = vtanh.pop %v1566
  %v1713 = vtanh.pop %v1571
  %v1714 = vtanh.pop %v1576
  %v1715 = vtanh.pop %v1581
  %v1716 = vtanh.pop %v1586
  %v1717 = vtanh.pop %v1591
  %v1718 = vtanh.pop %v1596
  %v1719 = vtanh.pop %v1601
  %v1720 = vtanh.pop %v1606
  %v1721 = vtanh.pop %v1611
  %v1722 = vtanh.pop %v1616
  %v1723 = vtanh.pop %v1621
  %v1724 = vtanh.pop %v1626
  %v1725 = vtanh.pop %v1631
  %v1726 = vtanh.pop %v1636
  %v1727 = vtanh.pop %v1641
  %v1728 = vtanh.pop %v1646
  %v1729 = vtanh.pop %v1651
  %v1730 = vtanh.pop %v1656
  %v1731 = vtanh.pop %v1661
  %v1732 = vtanh.pop %v1666
  %v1733 = vtanh.pop %v1671
  %v1734 = vtanh.pop %v1676
  %v1735 = vtanh.pop %v1681
  %v1736 = vtanh.pop %v1686
  %v1737 = vtanh.pop %v1691
  %v1738 = vtanh.pop %v1696
  %v1739 = vtanh.pop %v1701
  %v1740 = vtanh.pop %v1706
  %1741 = vst [vmem:[%s12] sm:$0xff] %v1709
  %1742 = vst [vmem:[%s12 + $0x8] sm:$0xff] %v1710
  %1743 = vst [vmem:[%s12 + $0x10] sm:$0xff] %v1711
  %1744 = vst [vmem:[%s12 + $0x18] sm:$0xff] %v1712
  %1745 = vst [vmem:[%s12 + $0x20] sm:$0xff] %v1713
  %1746 = vst [vmem:[%s12 + $0x28] sm:$0xff] %v1714
  %1747 = vst [vmem:[%s12 + $0x30] sm:$0xff] %v1715
  %1748 = vst [vmem:[%s12 + $0x38] sm:$0xff] %v1716
  %1749 = vst [vmem:[%s12 + $0x40] sm:$0xff] %v1717
  %1750 = vst [vmem:[%s12 + $0x48] sm:$0xff] %v1718
  %1751 = vst [vmem:[%s12 + $0x50] sm:$0xff] %v1719
  %1752 = vst [vmem:[%s12 + $0x58] sm:$0xff] %v1720
  %1753 = vst [vmem:[%s12 + $0x60] sm:$0xff] %v1721
  %1754 = vst [vmem:[%s12 + $0x68] sm:$0xff] %v1722
  %1755 = vst [vmem:[%s12 + $0x70] sm:$0xff] %v1723
  %1756 = vst [vmem:[%s12 + $0x78] sm:$0xff] %v1724
  %1757 = vst [vmem:[%s12 + $0x80] sm:$0xff] %v1725
  %1758 = vst [vmem:[%s12 + $0x88] sm:$0xff] %v1726
  %1759 = vst [vmem:[%s12 + $0x90] sm:$0xff] %v1727
  %1760 = vst [vmem:[%s12 + $0x98] sm:$0xff] %v1728
  %1761 = vst [vmem:[%s12 + $0xa0] sm:$0xff] %v1729
  %1762 = vst [vmem:[%s12 + $0xa8] sm:$0xff] %v1730
  %1763 = vst [vmem:[%s12 + $0xb0] sm:$0xff] %v1731
  %1764 = vst [vmem:[%s12 + $0xb8] sm:$0xff] %v1732
  %1765 = vst [vmem:[%s12 + $0xc0] sm:$0xff] %v1733
  %1766 = vst [vmem:[%s12 + $0xc8] sm:$0xff] %v1734
  %1767 = vst [vmem:[%s12 + $0xd0] sm:$0xff] %v1735
  %1768 = vst [vmem:[%s12 + $0xd8] sm:$0xff] %v1736
  %1769 = vst [vmem:[%s12 + $0xe0] sm:$0xff] %v1737
  %1770 = vst [vmem:[%s12 + $0xe8] sm:$0xff] %v1738
  %1771 = vst [vmem:[%s12 + $0xf0] sm:$0xff] %v1739
  %1772 = vst [vmem:[%s12 + $0xf8] sm:$0xff] %v1740
  // Predicated region
  $region50: #{_lambda_.1} parent=0 // pred_check
    _
  $region51: #{_lambda_.1} parent=0 // pred_check_branch
    %1774 = sbr.rel (0) target = $region53
  $region52: #{_lambda_.1} parent=0 // pred_region
    _
  $region53: #{_lambda_.1} parent=0 // pred_fallthru
    _
  // Predicated region
  $region54: #{_lambda_.1} parent=0 // pred_check
    _
  $region55: #{_lambda_.1} parent=0 // pred_check_branch
    %1776 = sbr.rel (0) target = $region57
  $region56: #{_lambda_.1} parent=0 // pred_region
    _
  $region57: #{_lambda_.1} parent=0 // pred_fallthru
    _

</llo_original>
